<compile_context>
chip_gen: v7x
topology: tpu7x:2x2x1
jax: 0.10.0
libtpu: 0.0.40
codegen_flags: <defaults>
</compile_context>

<pallas_src>
import functools

import jax
import jax.numpy as jnp
import numpy as np
from jax import lax
from jax.experimental import pallas as pl
from jax.experimental.pallas import tpu as pltpu


def _pick_time_block(seq_len, batch, vocab, input_dim, hidden,
                     cap=32, budget_bytes=8 << 20):
    """Largest time-block <= cap whose pipelined blocks fit a small VMEM budget."""
    per_step = batch * (vocab * 4 * 2          # f32 one-hot out, double-buffered
                        + vocab * 4 * 2        # f32 gumbel in, double-buffered
                        + input_dim * 2 * 2    # bf16 noise in, double-buffered
                        + 4 * hidden * 4)      # f32 pre-projection scratch
    return int(max(1, min(cap, seq_len, budget_bytes // max(per_step, 1))))


# ----------------------------------------------------------------------------
# Kernel: one time-block (tb_steps LSTM steps) per grid iteration.
# ----------------------------------------------------------------------------
def _lstm_gen_kernel(*refs, hidden, vocab, input_dim, tb_steps, autoregressive,
                     unroll):
    it = iter(refs)
    x_ref = next(it)                       # non-AR: (Tb,B,I) bf16 noise block
    #                                        AR    : (1,B,4H) f32 projected x0
    g_ref = next(it)                       # (Tb,B,V) f32 gumbel block
    if autoregressive:
        whh_ref = next(it)                 # (H,4H) bf16
        wlin_ref = next(it)                # (H,V)  bf16
        blin_ref = next(it)                # (1,V)  f32
        embg_ref = next(it)                # (V,4H) f32  (emb @ Wih^T + b)
    else:
        wih_ref = next(it)                 # (I,4H) bf16
        b_ref = next(it)                   # (1,4H) f32
        whh_ref = next(it)
        wlin_ref = next(it)
        blin_ref = next(it)
        embg_ref = None
    out_ref = next(it)                     # (Tb,B,V) f32
    h_ref = next(it)                       # (B,H)  f32 scratch (persists)
    c_ref = next(it)                       # (B,H)  f32 scratch (persists)
    xp_ref = next(it)                      # AR: (B,4H) f32 ; non-AR: (Tb,B,4H) f32

    tb = pl.program_id(0)
    H = hidden
    B = out_ref.shape[1]
    f32 = jnp.float32

    @pl.when(tb == 0)
    def _init():
        h_ref[...] = jnp.zeros_like(h_ref)
        c_ref[...] = jnp.zeros_like(c_ref)
        if autoregressive:
            xp_ref[...] = x_ref[0].astype(f32)     # projected initial input

    # Hoist loop-invariant weight loads out of the step loop.
    whh = whh_ref[...]
    wlin = wlin_ref[...]
    blin = blin_ref[...]
    wdt = whh.dtype
    embg = embg_ref[...] if autoregressive else None
    col = lax.broadcasted_iota(jnp.int32, (B, vocab), 1)

    if not autoregressive:
        # Block-level input pre-projection: one big MXU matmul (M = Tb*B) instead
        # of Tb tiny ones on the serial critical path.  Bias folded in here.
        xb = x_ref[...]                                            # (Tb,B,I) bf16
        xp = jnp.dot(xb.reshape(tb_steps * B, input_dim), wih_ref[...],
                     preferred_element_type=f32) + b_ref[...]
        xp_ref[...] = xp.reshape(tb_steps, B, 4 * H)

    def one_step(s, carry):
        if autoregressive:
            h, c, xp = carry
        else:
            h, c = carry
            xp = xp_ref[s]                                         # (B,4H), has bias

        # LSTM gates (PyTorch order i, f, g, o); recurrent matmul only per step.
        gates = xp + jnp.dot(h.astype(wdt), whh, preferred_element_type=f32)
        i_g = jax.nn.sigmoid(gates[:, 0 * H:1 * H])
        f_g = jax.nn.sigmoid(gates[:, 1 * H:2 * H])
        g_g = jnp.tanh(gates[:, 2 * H:3 * H])
        o_g = jax.nn.sigmoid(gates[:, 3 * H:4 * H])
        c_new = f_g * c + i_g * g_g
        h_new = o_g * jnp.tanh(c_new)

        # latent_linear + gumbel; hard gumbel-softmax forward value == one-hot of
        # the (first) argmax.  tau scaling dropped (argmax is scale-invariant).
        logits = jnp.dot(h_new.astype(wdt), wlin, preferred_element_type=f32) + blin
        z = logits + g_ref[s]
        m = jnp.max(z, axis=-1, keepdims=True)
        first = jnp.min(jnp.where(z >= m, col, vocab), axis=-1, keepdims=True)
        one_hot = (col == first).astype(f32)
        out_ref[s] = one_hot

        if autoregressive:
            # next projected input = one_hot @ (emb @ Wih^T + b)  (exact row pick)
            xp_next = jnp.dot(one_hot, embg, preferred_element_type=f32)
            return h_new, c_new, xp_next
        return h_new, c_new

    if autoregressive:
        init = (h_ref[...], c_ref[...], xp_ref[...])
    else:
        init = (h_ref[...], c_ref[...])
    fin = lax.fori_loop(0, tb_steps, one_step, init, unroll=unroll)

    h_ref[...] = fin[0]
    c_ref[...] = fin[1]
    if autoregressive:
        xp_ref[...] = fin[2]


# ----------------------------------------------------------------------------
# pallas_call wrapper
# ----------------------------------------------------------------------------
def _run_generator(x_in, gumbel_tm, params, *, seq_len_padded, batch, input_dim,
                   hidden, vocab, autoregressive, time_block):
    tb = time_block
    assert seq_len_padded % tb == 0
    n_blocks = seq_len_padded // tb

    kernel = functools.partial(
        _lstm_gen_kernel, hidden=hidden, vocab=vocab, input_dim=input_dim,
        tb_steps=tb, autoregressive=autoregressive, unroll=min(tb, 8))

    in_specs = []
    inputs = []
    if autoregressive:
        # fixed projected initial input; only read at block 0
        in_specs.append(pl.BlockSpec((1, batch, 4 * hidden), lambda t: (0, 0, 0)))
        inputs.append(x_in)
    else:
        in_specs.append(pl.BlockSpec((tb, batch, input_dim), lambda t: (t, 0, 0)))
        inputs.append(x_in)

    in_specs.append(pl.BlockSpec((tb, batch, vocab), lambda t: (t, 0, 0)))
    inputs.append(gumbel_tm)

    # Invariant weights (constant block index).  NOTE: at production sizes add
    # pipeline_mode=pl.Buffered(1) here and vocab-tile wlin_t on v7x.
    if not autoregressive:
        in_specs.append(pl.BlockSpec((input_dim, 4 * hidden), lambda t: (0, 0)))
        inputs.append(params["wih_t"])
        in_specs.append(pl.BlockSpec((1, 4 * hidden), lambda t: (0, 0)))
        inputs.append(params["b"])
    in_specs.append(pl.BlockSpec((hidden, 4 * hidden), lambda t: (0, 0)))
    inputs.append(params["whh_t"])
    in_specs.append(pl.BlockSpec((hidden, vocab), lambda t: (0, 0)))
    inputs.append(params["wlin_t"])
    in_specs.append(pl.BlockSpec((1, vocab), lambda t: (0, 0)))
    inputs.append(params["blin"])
    if autoregressive:
        in_specs.append(pl.BlockSpec((vocab, 4 * hidden), lambda t: (0, 0)))
        inputs.append(params["emb_gate"])

    scratch = [pltpu.VMEM((batch, hidden), jnp.float32),        # h
               pltpu.VMEM((batch, hidden), jnp.float32)]        # c
    if autoregressive:
        scratch.append(pltpu.VMEM((batch, 4 * hidden), jnp.float32))       # fed-back xW
    else:
        scratch.append(pltpu.VMEM((tb, batch, 4 * hidden), jnp.float32))   # block xW

    return pl.pallas_call(
        kernel,
        out_shape=jax.ShapeDtypeStruct((seq_len_padded, batch, vocab), jnp.float32),
        grid_spec=pltpu.PrefetchScalarGridSpec(
            num_scalar_prefetch=0,
            grid=(n_blocks,),
            in_specs=in_specs,
            out_specs=pl.BlockSpec((tb, batch, vocab), lambda t: (t, 0, 0)),
            scratch_shapes=scratch,
        ),
        compiler_params=pltpu.CompilerParams(
            dimension_semantics=("arbitrary",)),   # recurrence: must stay sequential
    )(*inputs)


# ----------------------------------------------------------------------------
# Module-like wrapper with deterministic parameter init
# ----------------------------------------------------------------------------
class DiscreteLSTMGeneratorPallas:
    def __init__(self, vocab_size, seq_len, input_size, hidden_size,
                 softmax_temperature=1.0, key=None, weight_dtype=jnp.bfloat16):
        self.vocab_size = vocab_size
        self.seq_len = seq_len
        self.embedding_dim = input_size
        self.latent_dim = hidden_size
        # tau only rescales the logits+gumbel; the hard forward value (argmax
        # one-hot) is invariant to it, so it is not used in the kernel.
        self.tau = float(softmax_temperature)

        key = jax.random.PRNGKey(42) if key is None else key
        ks = jax.random.split(key, 7)
        k = 1.0 / np.sqrt(hidden_size)
        wih = jax.random.uniform(ks[0], (4 * hidden_size, input_size), jnp.float32, -k, k)
        whh = jax.random.uniform(ks[1], (4 * hidden_size, hidden_size), jnp.float32, -k, k)
        b_ih = jax.random.uniform(ks[2], (4 * hidden_size,), jnp.float32, -k, k)
        b_hh = jax.random.uniform(ks[3], (4 * hidden_size,), jnp.float32, -k, k)
        wlin = jax.random.uniform(ks[4], (vocab_size, hidden_size), jnp.float32, -k, k)
        blin = jax.random.uniform(ks[5], (vocab_size,), jnp.float32, -k, k)
        emb = jax.random.normal(ks[6], (vocab_size, input_size), jnp.float32)

        wih_t = wih.T.astype(weight_dtype)                       # (I, 4H)
        whh_t = whh.T.astype(weight_dtype)                       # (H, 4H)
        b = (b_ih + b_hh).reshape(1, -1).astype(jnp.float32)     # (1, 4H)
        # Fold embedding + input-gate weight (+ bias; one-hot rows sum to 1):
        emb_gate = jnp.dot(emb.astype(weight_dtype), wih_t,
                           preferred_element_type=jnp.float32) + b   # (V, 4H) f32
        self.params = dict(
            wih_t=wih_t, whh_t=whh_t, b=b,
            wlin_t=wlin.T.astype(weight_dtype),                  # (H, V)
            blin=blin.reshape(1, -1).astype(jnp.float32),        # (1, V)
            emb_gate=emb_gate)

    def __call__(self, inputs, gumbel_key):
        B = inputs.shape[0]
        T = self.seq_len
        tb = _pick_time_block(T, B, self.vocab_size, self.embedding_dim,
                              self.latent_dim)
        t_pad = ((T + tb - 1) // tb) * tb        # whole number of blocks (ragged tail padded)

        # Host-side Gumbel noise, generated directly time-major (no transpose).
        gumbel = jax.random.gumbel(gumbel_key, (t_pad, B, self.vocab_size), jnp.float32)

        if inputs.ndim == 3:                     # _forward: noise [B, T, I]
            assert inputs.shape[1] == T
            x_tm = jnp.transpose(inputs, (1, 0, 2)).astype(jnp.bfloat16)
            if t_pad > T:
                x_tm = jnp.pad(x_tm, ((0, t_pad - T), (0, 0), (0, 0)))
            x_in, ar = x_tm, False
        elif inputs.ndim == 2:                   # _forward_2d: [B, I]
            x0p = (jnp.dot(inputs.astype(jnp.bfloat16), self.params["wih_t"],
                           preferred_element_type=jnp.float32)
                   + self.params["b"])[None]     # (1, B, 4H), bias included
            x_in, ar = x0p, True
        else:
            raise Exception("Invalid input.")

        out_tm = _run_generator(
            x_in, gumbel, self.params, seq_len_padded=t_pad, batch=B,
            input_dim=self.embedding_dim, hidden=self.latent_dim,
            vocab=self.vocab_size, autoregressive=ar, time_block=tb)
        out = jnp.transpose(out_tm[:T], (1, 0, 2))               # [B, T, V]
        return out, gumbel[:T]


# ----------------------------------------------------------------------------
# Pure-JAX references (lax.scan), mirroring the kernel math exactly.
# ----------------------------------------------------------------------------
def _ref_cell(params, h, c, xproj, g, vocab):
    whh_t, wlin_t, blin = params["whh_t"], params["wlin_t"], params["blin"]
    H = whh_t.shape[0]
    wdt = whh_t.dtype
    gates = xproj + jnp.dot(h.astype(wdt), whh_t, preferred_element_type=jnp.float32)
    i_g = jax.nn.sigmoid(gates[:, 0:H]); f_g = jax.nn.sigmoid(gates[:, H:2 * H])
    g_g = jnp.tanh(gates[:, 2 * H:3 * H]); o_g = jax.nn.sigmoid(gates[:, 3 * H:4 * H])
    c = f_g * c + i_g * g_g
    h = o_g * jnp.tanh(c)
    z = jnp.dot(h.astype(wdt), wlin_t, preferred_element_type=jnp.float32) + blin + g
    oh = jax.nn.one_hot(jnp.argmax(z, -1), vocab, dtype=jnp.float32)
    return h, c, oh


def reference_3d(noise, gumbel_tm, params, vocab):
    x_tm = jnp.transpose(noise, (1, 0, 2)).astype(jnp.bfloat16)
    B, H = x_tm.shape[1], params["whh_t"].shape[0]
    xproj_tm = jnp.dot(x_tm, params["wih_t"],
                       preferred_element_type=jnp.float32) + params["b"]

    def step(carry, xs):
        h, c = carry
        xp, g = xs
        h, c, oh = _ref_cell(params, h, c, xp, g, vocab)
        return (h, c), oh

    _, ohs = lax.scan(step, (jnp.zeros((B, H)), jnp.zeros((B, H))),
                      (xproj_tm, gumbel_tm))
    return jnp.transpose(ohs, (1, 0, 2))


def reference_2d(x0, gumbel_tm, params, vocab):
    B, H = x0.shape[0], params["whh_t"].shape[0]
    xp0 = jnp.dot(x0.astype(jnp.bfloat16), params["wih_t"],
                  preferred_element_type=jnp.float32) + params["b"]

    def step(carry, g):
        h, c, xp = carry
        h, c, oh = _ref_cell(params, h, c, xp, g, vocab)
        xp_next = jnp.dot(oh, params["emb_gate"], preferred_element_type=jnp.float32)
        return (h, c, xp_next), oh

    _, ohs = lax.scan(step, (jnp.zeros((B, H)), jnp.zeros((B, H)), xp0), gumbel_tm)
    return jnp.transpose(ohs, (1, 0, 2))


# ----------------------------------------------------------------------------
if __name__ == "__main__":
    VOCAB, SEQ, INPUT, HIDDEN, BATCH = 128, 8, 32, 32, 8

    key = jax.random.PRNGKey(0)
    k_noise, k_2d, k_g1, k_g2, k_init = jax.random.split(key, 5)

    gen = DiscreteLSTMGeneratorPallas(VOCAB, SEQ, INPUT, HIDDEN,
                                      softmax_temperature=1.0, key=k_init)

    def _check_onehot(o):
        o = np.asarray(o)
        assert o.shape == (BATCH, SEQ, VOCAB)
        assert np.allclose(o.sum(-1), 1.0)
        assert set(np.unique(o)) <= {0.0, 1.0}

    # ---- 3-D path (_forward) vs. pure-JAX reference (same gumbel stream) ----
    noise = jax.random.normal(k_noise, (BATCH, SEQ, INPUT), jnp.float32)
    out3d, gum3d = gen(noise, k_g1)
    out3d = jax.block_until_ready(out3d)
    _check_onehot(out3d)
    ref3d = reference_3d(noise, gum3d, gen.params, VOCAB)
    match3d = float(jnp.mean((jnp.argmax(out3d, -1) == jnp.argmax(ref3d, -1))
                             .astype(jnp.float32)))
    assert match3d >= 0.95, f"3d argmax match {match3d}"

    # ---- 2-D path (_forward_2d) vs. pure-JAX reference ----
    x2d = jax.random.normal(k_2d, (BATCH, INPUT), jnp.float32)
    out2d, gum2d = gen(x2d, k_g2)
    out2d = jax.block_until_ready(out2d)
    _check_onehot(out2d)
    ref2d = reference_2d(x2d, gum2d, gen.params, VOCAB)
    match2d = float(jnp.mean((jnp.argmax(out2d, -1) == jnp.argmax(ref2d, -1))
                             .astype(jnp.float32)))
    assert match2d >= 0.95, f"2d argmax match {match2d}"

    print("KERNEL_OK")
</pallas_src>

<mosaic_0001>
module attributes {stable_mosaic.version = 11 : i64} {
  func.func @_lstm_gen_kernel(%arg0: i32, %arg1: memref<8x8x32xbf16, #tpu.memory_space<vmem>>, %arg2: memref<8x8x128xf32, #tpu.memory_space<vmem>>, %arg3: memref<32x128xbf16, #tpu.memory_space<vmem>>, %arg4: memref<1x128xf32, #tpu.memory_space<vmem>>, %arg5: memref<32x128xbf16, #tpu.memory_space<vmem>>, %arg6: memref<32x128xbf16, #tpu.memory_space<vmem>>, %arg7: memref<1x128xf32, #tpu.memory_space<vmem>>, %arg8: memref<8x8x128xf32, #tpu.memory_space<vmem>>, %arg9: memref<8x32xf32, #tpu.memory_space<vmem>>, %arg10: memref<8x32xf32, #tpu.memory_space<vmem>>, %arg11: memref<8x8x128xf32, #tpu.memory_space<vmem>>) attributes {dimension_semantics = [#tpu.dimension_semantics<arbitrary>], iteration_bounds = array<i64: 1>, scalar_prefetch = 0 : i64, scratch_operands = 3 : i64, tpu.core_type = #tpu.core_type<tc>, window_params = [{transform_indices = @transform_0, window_bounds = array<i64: 8, 8, 32>}, {transform_indices = @transform_1, window_bounds = array<i64: 8, 8, 128>}, {pipeline_mode = #tpu.pipeline_mode<synchronous>, transform_indices = @transform_2, window_bounds = array<i64: 32, 128>}, {pipeline_mode = #tpu.pipeline_mode<synchronous>, transform_indices = @transform_3, window_bounds = array<i64: 1, 128>}, {pipeline_mode = #tpu.pipeline_mode<synchronous>, transform_indices = @transform_4, window_bounds = array<i64: 32, 128>}, {pipeline_mode = #tpu.pipeline_mode<synchronous>, transform_indices = @transform_5, window_bounds = array<i64: 32, 128>}, {pipeline_mode = #tpu.pipeline_mode<synchronous>, transform_indices = @transform_6, window_bounds = array<i64: 1, 128>}, {transform_indices = @transform_7, window_bounds = array<i64: 8, 8, 128>}]} {
    %c0_i32 = arith.constant 0 : i32
    %0 = arith.cmpi eq, %arg0, %c0_i32 : i32
    %1 = arith.extui %0 : i1 to i32
    %c0_i32_0 = arith.constant 0 : i32
    %2 = arith.cmpi ne, %1, %c0_i32_0 : i32
    scf.if %2 {
      %cst_136 = arith.constant 0.000000e+00 : f32
      %460 = vector.broadcast %cst_136 : f32 to vector<8x32xf32>
      %c0_137 = arith.constant 0 : index
      %c0_138 = arith.constant 0 : index
      %461 = vector.load %arg9[%c0_137, %c0_138] : memref<8x32xf32, #tpu.memory_space<vmem>>, vector<8x32xf32>
      tpu.vector_store %arg9[%c0_137, %c0_138], %460 {strides = array<i32>} : memref<8x32xf32, #tpu.memory_space<vmem>>, vector<8x32xf32>,
      %cst_139 = arith.constant 0.000000e+00 : f32
      %462 = vector.broadcast %cst_139 : f32 to vector<8x32xf32>
      %c0_140 = arith.constant 0 : index
      %c0_141 = arith.constant 0 : index
      %463 = vector.load %arg10[%c0_140, %c0_141] : memref<8x32xf32, #tpu.memory_space<vmem>>, vector<8x32xf32>
      tpu.vector_store %arg10[%c0_140, %c0_141], %462 {strides = array<i32>} : memref<8x32xf32, #tpu.memory_space<vmem>>, vector<8x32xf32>,
    } else {
    }
    %c0 = arith.constant 0 : index
    %c0_1 = arith.constant 0 : index
    %3 = vector.load %arg5[%c0, %c0_1] : memref<32x128xbf16, #tpu.memory_space<vmem>>, vector<32x128xbf16>
    %c0_2 = arith.constant 0 : index
    %c0_3 = arith.constant 0 : index
    %4 = vector.load %arg6[%c0_2, %c0_3] : memref<32x128xbf16, #tpu.memory_space<vmem>>, vector<32x128xbf16>
    %c0_4 = arith.constant 0 : index
    %c0_5 = arith.constant 0 : index
    %5 = vector.load %arg7[%c0_4, %c0_5] : memref<1x128xf32, #tpu.memory_space<vmem>>, vector<1x128xf32>
    %6 = tpu.iota {dimensions = array<i32: 1>} : vector<8x128xi32>
    %c0_6 = arith.constant 0 : index
    %c0_7 = arith.constant 0 : index
    %c0_8 = arith.constant 0 : index
    %7 = vector.load %arg1[%c0_6, %c0_7, %c0_8] : memref<8x8x32xbf16, #tpu.memory_space<vmem>>, vector<8x8x32xbf16>
    %8 = vector.shape_cast %7 : vector<8x8x32xbf16> to vector<64x32xbf16>
    %c0_9 = arith.constant 0 : index
    %c0_10 = arith.constant 0 : index
    %9 = vector.load %arg3[%c0_9, %c0_10] : memref<32x128xbf16, #tpu.memory_space<vmem>>, vector<32x128xbf16>
    %cst = arith.constant dense<0.000000e+00> : vector<64x128xf32>
    %10 = tpu.matmul %8, %9, %cst {dimension_numbers = #tpu.dot_dimension_numbers<[1], [0], [0], [1], [0, 0, 1, 1], [], []>} : vector<64x32xbf16>, vector<32x128xbf16>, vector<64x128xf32> -> vector<64x128xf32>
    %c0_11 = arith.constant 0 : index
    %c0_12 = arith.constant 0 : index
    %11 = vector.load %arg4[%c0_11, %c0_12] : memref<1x128xf32, #tpu.memory_space<vmem>>, vector<1x128xf32>
    %12 = vector.broadcast %11 : vector<1x128xf32> to vector<64x128xf32>
    %13 = arith.addf %10, %12 : vector<64x128xf32>
    %14 = vector.shape_cast %13 : vector<64x128xf32> to vector<8x8x128xf32>
    %c0_13 = arith.constant 0 : index
    %c0_14 = arith.constant 0 : index
    %c0_15 = arith.constant 0 : index
    %15 = vector.load %arg11[%c0_13, %c0_14, %c0_15] : memref<8x8x128xf32, #tpu.memory_space<vmem>>, vector<8x8x128xf32>
    tpu.vector_store %arg11[%c0_13, %c0_14, %c0_15], %14 {strides = array<i32>} : memref<8x8x128xf32, #tpu.memory_space<vmem>>, vector<8x8x128xf32>,
    %c0_16 = arith.constant 0 : index
    %c0_17 = arith.constant 0 : index
    %16 = vector.load %arg9[%c0_16, %c0_17] : memref<8x32xf32, #tpu.memory_space<vmem>>, vector<8x32xf32>
    %c0_18 = arith.constant 0 : index
    %c0_19 = arith.constant 0 : index
    %17 = vector.load %arg10[%c0_18, %c0_19] : memref<8x32xf32, #tpu.memory_space<vmem>>, vector<8x32xf32>
    %c0_i32_20 = arith.constant 0 : i32
    %18 = arith.index_cast %c0_i32_20 : i32 to index
    %c0_21 = arith.constant 0 : index
    %c0_22 = arith.constant 0 : index
    %19 = vector.load %arg11[%18, %c0_21, %c0_22] : memref<8x8x128xf32, #tpu.memory_space<vmem>>, vector<1x8x128xf32>
    %20 = vector.shape_cast %19 : vector<1x8x128xf32> to vector<8x128xf32>
    %21 = arith.truncf %16 : vector<8x32xf32> to vector<8x32xbf16>
    %cst_23 = arith.constant dense<0.000000e+00> : vector<8x128xf32>
    %22 = tpu.matmul %21, %3, %cst_23 {dimension_numbers = #tpu.dot_dimension_numbers<[1], [0], [0], [1], [0, 0, 1, 1], [], []>} : vector<8x32xbf16>, vector<32x128xbf16>, vector<8x128xf32> -> vector<8x128xf32>
    %23 = arith.addf %20, %22 : vector<8x128xf32>
    %24 = vector.extract_strided_slice %23 {offsets = [0, 0], sizes = [8, 32], strides = [1, 1]} : vector<8x128xf32> to vector<8x32xf32>
    %25 = arith.negf %24 : vector<8x32xf32>
    %26 = math.exp %25 : vector<8x32xf32>
    %cst_24 = arith.constant 1.000000e+00 : f32
    %27 = vector.broadcast %cst_24 : f32 to vector<8x32xf32>
    %28 = arith.addf %27, %26 : vector<8x32xf32>
    %29 = arith.divf %27, %28 : vector<8x32xf32>
    %30 = vector.extract_strided_slice %23 {offsets = [0, 32], sizes = [8, 32], strides = [1, 1]} : vector<8x128xf32> to vector<8x32xf32>
    %31 = arith.negf %30 : vector<8x32xf32>
    %32 = math.exp %31 : vector<8x32xf32>
    %cst_25 = arith.constant 1.000000e+00 : f32
    %33 = vector.broadcast %cst_25 : f32 to vector<8x32xf32>
    %34 = arith.addf %33, %32 : vector<8x32xf32>
    %35 = arith.divf %33, %34 : vector<8x32xf32>
    %36 = vector.extract_strided_slice %23 {offsets = [0, 64], sizes = [8, 32], strides = [1, 1]} : vector<8x128xf32> to vector<8x32xf32>
    %37 = math.tanh %36 : vector<8x32xf32>
    %38 = vector.extract_strided_slice %23 {offsets = [0, 96], sizes = [8, 32], strides = [1, 1]} : vector<8x128xf32> to vector<8x32xf32>
    %39 = arith.negf %38 : vector<8x32xf32>
    %40 = math.exp %39 : vector<8x32xf32>
    %cst_26 = arith.constant 1.000000e+00 : f32
    %41 = vector.broadcast %cst_26 : f32 to vector<8x32xf32>
    %42 = arith.addf %41, %40 : vector<8x32xf32>
    %43 = arith.divf %41, %42 : vector<8x32xf32>
    %44 = arith.mulf %35, %17 : vector<8x32xf32>
    %45 = arith.mulf %29, %37 : vector<8x32xf32>
    %46 = arith.addf %44, %45 : vector<8x32xf32>
    %47 = math.tanh %46 : vector<8x32xf32>
    %48 = arith.mulf %43, %47 : vector<8x32xf32>
    %49 = arith.truncf %48 : vector<8x32xf32> to vector<8x32xbf16>
    %cst_27 = arith.constant dense<0.000000e+00> : vector<8x128xf32>
    %50 = tpu.matmul %49, %4, %cst_27 {dimension_numbers = #tpu.dot_dimension_numbers<[1], [0], [0], [1], [0, 0, 1, 1], [], []>} : vector<8x32xbf16>, vector<32x128xbf16>, vector<8x128xf32> -> vector<8x128xf32>
    %51 = vector.broadcast %5 : vector<1x128xf32> to vector<8x128xf32>
    %52 = arith.addf %50, %51 : vector<8x128xf32>
    %53 = arith.index_cast %c0_i32_20 : i32 to index
    %c0_28 = arith.constant 0 : index
    %c0_29 = arith.constant 0 : index
    %54 = vector.load %arg2[%53, %c0_28, %c0_29] : memref<8x8x128xf32, #tpu.memory_space<vmem>>, vector<1x8x128xf32>
    %55 = vector.shape_cast %54 : vector<1x8x128xf32> to vector<8x128xf32>
    %56 = arith.addf %52, %55 : vector<8x128xf32>
    %cst_30 = arith.constant dense<0xFF800000> : vector<8xf32>
    %57 = vector.multi_reduction <maximumf>, %56, %cst_30 [1] : vector<8x128xf32> to vector<8xf32>
    %58 = vector.shape_cast %57 : vector<8xf32> to vector<8x1xf32>
    %59 = vector.broadcast %58 : vector<8x1xf32> to vector<8x128xf32>
    %60 = arith.cmpf oge, %56, %59 : vector<8x128xf32>
    %c128_i32 = arith.constant 128 : i32
    %61 = vector.broadcast %c128_i32 : i32 to vector<8x128xi32>
    %62 = arith.select %60, %6, %61 : vector<8x128xi1>, vector<8x128xi32>
    %cst_31 = arith.constant dense<2147483647> : vector<8xi32>
    %63 = vector.multi_reduction <minsi>, %62, %cst_31 [1] : vector<8x128xi32> to vector<8xi32>
    %64 = vector.shape_cast %63 : vector<8xi32> to vector<8x1xi32>
    %65 = vector.broadcast %64 : vector<8x1xi32> to vector<8x128xi32>
    %66 = arith.cmpi eq, %6, %65 : vector<8x128xi32>
    %67 = arith.extui %66 : vector<8x128xi1> to vector<8x128xi32>
    %68 = arith.sitofp %67 : vector<8x128xi32> to vector<8x128xf32>
    %69 = arith.index_cast %c0_i32_20 : i32 to index
    %c0_32 = arith.constant 0 : index
    %c0_33 = arith.constant 0 : index
    %70 = vector.load %arg8[%69, %c0_32, %c0_33] : memref<8x8x128xf32, #tpu.memory_space<vmem>>, vector<1x8x128xf32>
    %71 = vector.shape_cast %70 : vector<1x8x128xf32> to vector<8x128xf32>
    %72 = vector.shape_cast %68 : vector<8x128xf32> to vector<1x8x128xf32>
    tpu.vector_store %arg8[%69, %c0_32, %c0_33], %72 {strides = array<i32>} : memref<8x8x128xf32, #tpu.memory_space<vmem>>, vector<1x8x128xf32>,
    %c1_i32 = arith.constant 1 : i32
    %73 = arith.index_cast %c1_i32 : i32 to index
    %c0_34 = arith.constant 0 : index
    %c0_35 = arith.constant 0 : index
    %74 = vector.load %arg11[%73, %c0_34, %c0_35] : memref<8x8x128xf32, #tpu.memory_space<vmem>>, vector<1x8x128xf32>
    %75 = vector.shape_cast %74 : vector<1x8x128xf32> to vector<8x128xf32>
    %76 = arith.truncf %48 : vector<8x32xf32> to vector<8x32xbf16>
    %cst_36 = arith.constant dense<0.000000e+00> : vector<8x128xf32>
    %77 = tpu.matmul %76, %3, %cst_36 {dimension_numbers = #tpu.dot_dimension_numbers<[1], [0], [0], [1], [0, 0, 1, 1], [], []>} : vector<8x32xbf16>, vector<32x128xbf16>, vector<8x128xf32> -> vector<8x128xf32>
    %78 = arith.addf %75, %77 : vector<8x128xf32>
    %79 = vector.extract_strided_slice %78 {offsets = [0, 0], sizes = [8, 32], strides = [1, 1]} : vector<8x128xf32> to vector<8x32xf32>
    %80 = arith.negf %79 : vector<8x32xf32>
    %81 = math.exp %80 : vector<8x32xf32>
    %cst_37 = arith.constant 1.000000e+00 : f32
    %82 = vector.broadcast %cst_37 : f32 to vector<8x32xf32>
    %83 = arith.addf %82, %81 : vector<8x32xf32>
    %84 = arith.divf %82, %83 : vector<8x32xf32>
    %85 = vector.extract_strided_slice %78 {offsets = [0, 32], sizes = [8, 32], strides = [1, 1]} : vector<8x128xf32> to vector<8x32xf32>
    %86 = arith.negf %85 : vector<8x32xf32>
    %87 = math.exp %86 : vector<8x32xf32>
    %cst_38 = arith.constant 1.000000e+00 : f32
    %88 = vector.broadcast %cst_38 : f32 to vector<8x32xf32>
    %89 = arith.addf %88, %87 : vector<8x32xf32>
    %90 = arith.divf %88, %89 : vector<8x32xf32>
    %91 = vector.extract_strided_slice %78 {offsets = [0, 64], sizes = [8, 32], strides = [1, 1]} : vector<8x128xf32> to vector<8x32xf32>
    %92 = math.tanh %91 : vector<8x32xf32>
    %93 = vector.extract_strided_slice %78 {offsets = [0, 96], sizes = [8, 32], strides = [1, 1]} : vector<8x128xf32> to vector<8x32xf32>
    %94 = arith.negf %93 : vector<8x32xf32>
    %95 = math.exp %94 : vector<8x32xf32>
    %cst_39 = arith.constant 1.000000e+00 : f32
    %96 = vector.broadcast %cst_39 : f32 to vector<8x32xf32>
    %97 = arith.addf %96, %95 : vector<8x32xf32>
    %98 = arith.divf %96, %97 : vector<8x32xf32>
    %99 = arith.mulf %90, %46 : vector<8x32xf32>
    %100 = arith.mulf %84, %92 : vector<8x32xf32>
    %101 = arith.addf %99, %100 : vector<8x32xf32>
    %102 = math.tanh %101 : vector<8x32xf32>
    %103 = arith.mulf %98, %102 : vector<8x32xf32>
    %104 = arith.truncf %103 : vector<8x32xf32> to vector<8x32xbf16>
    %cst_40 = arith.constant dense<0.000000e+00> : vector<8x128xf32>
    %105 = tpu.matmul %104, %4, %cst_40 {dimension_numbers = #tpu.dot_dimension_numbers<[1], [0], [0], [1], [0, 0, 1, 1], [], []>} : vector<8x32xbf16>, vector<32x128xbf16>, vector<8x128xf32> -> vector<8x128xf32>
    %106 = vector.broadcast %5 : vector<1x128xf32> to vector<8x128xf32>
    %107 = arith.addf %105, %106 : vector<8x128xf32>
    %108 = arith.index_cast %c1_i32 : i32 to index
    %c0_41 = arith.constant 0 : index
    %c0_42 = arith.constant 0 : index
    %109 = vector.load %arg2[%108, %c0_41, %c0_42] : memref<8x8x128xf32, #tpu.memory_space<vmem>>, vector<1x8x128xf32>
    %110 = vector.shape_cast %109 : vector<1x8x128xf32> to vector<8x128xf32>
    %111 = arith.addf %107, %110 : vector<8x128xf32>
    %cst_43 = arith.constant dense<0xFF800000> : vector<8xf32>
    %112 = vector.multi_reduction <maximumf>, %111, %cst_43 [1] : vector<8x128xf32> to vector<8xf32>
    %113 = vector.shape_cast %112 : vector<8xf32> to vector<8x1xf32>
    %114 = vector.broadcast %113 : vector<8x1xf32> to vector<8x128xf32>
    %115 = arith.cmpf oge, %111, %114 : vector<8x128xf32>
    %c128_i32_44 = arith.constant 128 : i32
    %116 = vector.broadcast %c128_i32_44 : i32 to vector<8x128xi32>
    %117 = arith.select %115, %6, %116 : vector<8x128xi1>, vector<8x128xi32>
    %cst_45 = arith.constant dense<2147483647> : vector<8xi32>
    %118 = vector.multi_reduction <minsi>, %117, %cst_45 [1] : vector<8x128xi32> to vector<8xi32>
    %119 = vector.shape_cast %118 : vector<8xi32> to vector<8x1xi32>
    %120 = vector.broadcast %119 : vector<8x1xi32> to vector<8x128xi32>
    %121 = arith.cmpi eq, %6, %120 : vector<8x128xi32>
    %122 = arith.extui %121 : vector<8x128xi1> to vector<8x128xi32>
    %123 = arith.sitofp %122 : vector<8x128xi32> to vector<8x128xf32>
    %124 = arith.index_cast %c1_i32 : i32 to index
    %c0_46 = arith.constant 0 : index
    %c0_47 = arith.constant 0 : index
    %125 = vector.load %arg8[%124, %c0_46, %c0_47] : memref<8x8x128xf32, #tpu.memory_space<vmem>>, vector<1x8x128xf32>
    %126 = vector.shape_cast %125 : vector<1x8x128xf32> to vector<8x128xf32>
    %127 = vector.shape_cast %123 : vector<8x128xf32> to vector<1x8x128xf32>
    tpu.vector_store %arg8[%124, %c0_46, %c0_47], %127 {strides = array<i32>} : memref<8x8x128xf32, #tpu.memory_space<vmem>>, vector<1x8x128xf32>,
    %c2_i32 = arith.constant 2 : i32
    %128 = arith.index_cast %c2_i32 : i32 to index
    %c0_48 = arith.constant 0 : index
    %c0_49 = arith.constant 0 : index
    %129 = vector.load %arg11[%128, %c0_48, %c0_49] : memref<8x8x128xf32, #tpu.memory_space<vmem>>, vector<1x8x128xf32>
    %130 = vector.shape_cast %129 : vector<1x8x128xf32> to vector<8x128xf32>
    %131 = arith.truncf %103 : vector<8x32xf32> to vector<8x32xbf16>
    %cst_50 = arith.constant dense<0.000000e+00> : vector<8x128xf32>
    %132 = tpu.matmul %131, %3, %cst_50 {dimension_numbers = #tpu.dot_dimension_numbers<[1], [0], [0], [1], [0, 0, 1, 1], [], []>} : vector<8x32xbf16>, vector<32x128xbf16>, vector<8x128xf32> -> vector<8x128xf32>
    %133 = arith.addf %130, %132 : vector<8x128xf32>
    %134 = vector.extract_strided_slice %133 {offsets = [0, 0], sizes = [8, 32], strides = [1, 1]} : vector<8x128xf32> to vector<8x32xf32>
    %135 = arith.negf %134 : vector<8x32xf32>
    %136 = math.exp %135 : vector<8x32xf32>
    %cst_51 = arith.constant 1.000000e+00 : f32
    %137 = vector.broadcast %cst_51 : f32 to vector<8x32xf32>
    %138 = arith.addf %137, %136 : vector<8x32xf32>
    %139 = arith.divf %137, %138 : vector<8x32xf32>
    %140 = vector.extract_strided_slice %133 {offsets = [0, 32], sizes = [8, 32], strides = [1, 1]} : vector<8x128xf32> to vector<8x32xf32>
    %141 = arith.negf %140 : vector<8x32xf32>
    %142 = math.exp %141 : vector<8x32xf32>
    %cst_52 = arith.constant 1.000000e+00 : f32
    %143 = vector.broadcast %cst_52 : f32 to vector<8x32xf32>
    %144 = arith.addf %143, %142 : vector<8x32xf32>
    %145 = arith.divf %143, %144 : vector<8x32xf32>
    %146 = vector.extract_strided_slice %133 {offsets = [0, 64], sizes = [8, 32], strides = [1, 1]} : vector<8x128xf32> to vector<8x32xf32>
    %147 = math.tanh %146 : vector<8x32xf32>
    %148 = vector.extract_strided_slice %133 {offsets = [0, 96], sizes = [8, 32], strides = [1, 1]} : vector<8x128xf32> to vector<8x32xf32>
    %149 = arith.negf %148 : vector<8x32xf32>
    %150 = math.exp %149 : vector<8x32xf32>
    %cst_53 = arith.constant 1.000000e+00 : f32
    %151 = vector.broadcast %cst_53 : f32 to vector<8x32xf32>
    %152 = arith.addf %151, %150 : vector<8x32xf32>
    %153 = arith.divf %151, %152 : vector<8x32xf32>
    %154 = arith.mulf %145, %101 : vector<8x32xf32>
    %155 = arith.mulf %139, %147 : vector<8x32xf32>
    %156 = arith.addf %154, %155 : vector<8x32xf32>
    %157 = math.tanh %156 : vector<8x32xf32>
    %158 = arith.mulf %153, %157 : vector<8x32xf32>
    %159 = arith.truncf %158 : vector<8x32xf32> to vector<8x32xbf16>
    %cst_54 = arith.constant dense<0.000000e+00> : vector<8x128xf32>
    %160 = tpu.matmul %159, %4, %cst_54 {dimension_numbers = #tpu.dot_dimension_numbers<[1], [0], [0], [1], [0, 0, 1, 1], [], []>} : vector<8x32xbf16>, vector<32x128xbf16>, vector<8x128xf32> -> vector<8x128xf32>
    %161 = vector.broadcast %5 : vector<1x128xf32> to vector<8x128xf32>
    %162 = arith.addf %160, %161 : vector<8x128xf32>
    %163 = arith.index_cast %c2_i32 : i32 to index
    %c0_55 = arith.constant 0 : index
    %c0_56 = arith.constant 0 : index
    %164 = vector.load %arg2[%163, %c0_55, %c0_56] : memref<8x8x128xf32, #tpu.memory_space<vmem>>, vector<1x8x128xf32>
    %165 = vector.shape_cast %164 : vector<1x8x128xf32> to vector<8x128xf32>
    %166 = arith.addf %162, %165 : vector<8x128xf32>
    %cst_57 = arith.constant dense<0xFF800000> : vector<8xf32>
    %167 = vector.multi_reduction <maximumf>, %166, %cst_57 [1] : vector<8x128xf32> to vector<8xf32>
    %168 = vector.shape_cast %167 : vector<8xf32> to vector<8x1xf32>
    %169 = vector.broadcast %168 : vector<8x1xf32> to vector<8x128xf32>
    %170 = arith.cmpf oge, %166, %169 : vector<8x128xf32>
    %c128_i32_58 = arith.constant 128 : i32
    %171 = vector.broadcast %c128_i32_58 : i32 to vector<8x128xi32>
    %172 = arith.select %170, %6, %171 : vector<8x128xi1>, vector<8x128xi32>
    %cst_59 = arith.constant dense<2147483647> : vector<8xi32>
    %173 = vector.multi_reduction <minsi>, %172, %cst_59 [1] : vector<8x128xi32> to vector<8xi32>
    %174 = vector.shape_cast %173 : vector<8xi32> to vector<8x1xi32>
    %175 = vector.broadcast %174 : vector<8x1xi32> to vector<8x128xi32>
    %176 = arith.cmpi eq, %6, %175 : vector<8x128xi32>
    %177 = arith.extui %176 : vector<8x128xi1> to vector<8x128xi32>
    %178 = arith.sitofp %177 : vector<8x128xi32> to vector<8x128xf32>
    %179 = arith.index_cast %c2_i32 : i32 to index
    %c0_60 = arith.constant 0 : index
    %c0_61 = arith.constant 0 : index
    %180 = vector.load %arg8[%179, %c0_60, %c0_61] : memref<8x8x128xf32, #tpu.memory_space<vmem>>, vector<1x8x128xf32>
    %181 = vector.shape_cast %180 : vector<1x8x128xf32> to vector<8x128xf32>
    %182 = vector.shape_cast %178 : vector<8x128xf32> to vector<1x8x128xf32>
    tpu.vector_store %arg8[%179, %c0_60, %c0_61], %182 {strides = array<i32>} : memref<8x8x128xf32, #tpu.memory_space<vmem>>, vector<1x8x128xf32>,
    %c3_i32 = arith.constant 3 : i32
    %183 = arith.index_cast %c3_i32 : i32 to index
    %c0_62 = arith.constant 0 : index
    %c0_63 = arith.constant 0 : index
    %184 = vector.load %arg11[%183, %c0_62, %c0_63] : memref<8x8x128xf32, #tpu.memory_space<vmem>>, vector<1x8x128xf32>
    %185 = vector.shape_cast %184 : vector<1x8x128xf32> to vector<8x128xf32>
    %186 = arith.truncf %158 : vector<8x32xf32> to vector<8x32xbf16>
    %cst_64 = arith.constant dense<0.000000e+00> : vector<8x128xf32>
    %187 = tpu.matmul %186, %3, %cst_64 {dimension_numbers = #tpu.dot_dimension_numbers<[1], [0], [0], [1], [0, 0, 1, 1], [], []>} : vector<8x32xbf16>, vector<32x128xbf16>, vector<8x128xf32> -> vector<8x128xf32>
    %188 = arith.addf %185, %187 : vector<8x128xf32>
    %189 = vector.extract_strided_slice %188 {offsets = [0, 0], sizes = [8, 32], strides = [1, 1]} : vector<8x128xf32> to vector<8x32xf32>
    %190 = arith.negf %189 : vector<8x32xf32>
    %191 = math.exp %190 : vector<8x32xf32>
    %cst_65 = arith.constant 1.000000e+00 : f32
    %192 = vector.broadcast %cst_65 : f32 to vector<8x32xf32>
    %193 = arith.addf %192, %191 : vector<8x32xf32>
    %194 = arith.divf %192, %193 : vector<8x32xf32>
    %195 = vector.extract_strided_slice %188 {offsets = [0, 32], sizes = [8, 32], strides = [1, 1]} : vector<8x128xf32> to vector<8x32xf32>
    %196 = arith.negf %195 : vector<8x32xf32>
    %197 = math.exp %196 : vector<8x32xf32>
    %cst_66 = arith.constant 1.000000e+00 : f32
    %198 = vector.broadcast %cst_66 : f32 to vector<8x32xf32>
    %199 = arith.addf %198, %197 : vector<8x32xf32>
    %200 = arith.divf %198, %199 : vector<8x32xf32>
    %201 = vector.extract_strided_slice %188 {offsets = [0, 64], sizes = [8, 32], strides = [1, 1]} : vector<8x128xf32> to vector<8x32xf32>
    %202 = math.tanh %201 : vector<8x32xf32>
    %203 = vector.extract_strided_slice %188 {offsets = [0, 96], sizes = [8, 32], strides = [1, 1]} : vector<8x128xf32> to vector<8x32xf32>
    %204 = arith.negf %203 : vector<8x32xf32>
    %205 = math.exp %204 : vector<8x32xf32>
    %cst_67 = arith.constant 1.000000e+00 : f32
    %206 = vector.broadcast %cst_67 : f32 to vector<8x32xf32>
    %207 = arith.addf %206, %205 : vector<8x32xf32>
    %208 = arith.divf %206, %207 : vector<8x32xf32>
    %209 = arith.mulf %200, %156 : vector<8x32xf32>
    %210 = arith.mulf %194, %202 : vector<8x32xf32>
    %211 = arith.addf %209, %210 : vector<8x32xf32>
    %212 = math.tanh %211 : vector<8x32xf32>
    %213 = arith.mulf %208, %212 : vector<8x32xf32>
    %214 = arith.truncf %213 : vector<8x32xf32> to vector<8x32xbf16>
    %cst_68 = arith.constant dense<0.000000e+00> : vector<8x128xf32>
    %215 = tpu.matmul %214, %4, %cst_68 {dimension_numbers = #tpu.dot_dimension_numbers<[1], [0], [0], [1], [0, 0, 1, 1], [], []>} : vector<8x32xbf16>, vector<32x128xbf16>, vector<8x128xf32> -> vector<8x128xf32>
    %216 = vector.broadcast %5 : vector<1x128xf32> to vector<8x128xf32>
    %217 = arith.addf %215, %216 : vector<8x128xf32>
    %218 = arith.index_cast %c3_i32 : i32 to index
    %c0_69 = arith.constant 0 : index
    %c0_70 = arith.constant 0 : index
    %219 = vector.load %arg2[%218, %c0_69, %c0_70] : memref<8x8x128xf32, #tpu.memory_space<vmem>>, vector<1x8x128xf32>
    %220 = vector.shape_cast %219 : vector<1x8x128xf32> to vector<8x128xf32>
    %221 = arith.addf %217, %220 : vector<8x128xf32>
    %cst_71 = arith.constant dense<0xFF800000> : vector<8xf32>
    %222 = vector.multi_reduction <maximumf>, %221, %cst_71 [1] : vector<8x128xf32> to vector<8xf32>
    %223 = vector.shape_cast %222 : vector<8xf32> to vector<8x1xf32>
    %224 = vector.broadcast %223 : vector<8x1xf32> to vector<8x128xf32>
    %225 = arith.cmpf oge, %221, %224 : vector<8x128xf32>
    %c128_i32_72 = arith.constant 128 : i32
    %226 = vector.broadcast %c128_i32_72 : i32 to vector<8x128xi32>
    %227 = arith.select %225, %6, %226 : vector<8x128xi1>, vector<8x128xi32>
    %cst_73 = arith.constant dense<2147483647> : vector<8xi32>
    %228 = vector.multi_reduction <minsi>, %227, %cst_73 [1] : vector<8x128xi32> to vector<8xi32>
    %229 = vector.shape_cast %228 : vector<8xi32> to vector<8x1xi32>
    %230 = vector.broadcast %229 : vector<8x1xi32> to vector<8x128xi32>
    %231 = arith.cmpi eq, %6, %230 : vector<8x128xi32>
    %232 = arith.extui %231 : vector<8x128xi1> to vector<8x128xi32>
    %233 = arith.sitofp %232 : vector<8x128xi32> to vector<8x128xf32>
    %234 = arith.index_cast %c3_i32 : i32 to index
    %c0_74 = arith.constant 0 : index
    %c0_75 = arith.constant 0 : index
    %235 = vector.load %arg8[%234, %c0_74, %c0_75] : memref<8x8x128xf32, #tpu.memory_space<vmem>>, vector<1x8x128xf32>
    %236 = vector.shape_cast %235 : vector<1x8x128xf32> to vector<8x128xf32>
    %237 = vector.shape_cast %233 : vector<8x128xf32> to vector<1x8x128xf32>
    tpu.vector_store %arg8[%234, %c0_74, %c0_75], %237 {strides = array<i32>} : memref<8x8x128xf32, #tpu.memory_space<vmem>>, vector<1x8x128xf32>,
    %c4_i32 = arith.constant 4 : i32
    %238 = arith.index_cast %c4_i32 : i32 to index
    %c0_76 = arith.constant 0 : index
    %c0_77 = arith.constant 0 : index
    %239 = vector.load %arg11[%238, %c0_76, %c0_77] : memref<8x8x128xf32, #tpu.memory_space<vmem>>, vector<1x8x128xf32>
    %240 = vector.shape_cast %239 : vector<1x8x128xf32> to vector<8x128xf32>
    %241 = arith.truncf %213 : vector<8x32xf32> to vector<8x32xbf16>
    %cst_78 = arith.constant dense<0.000000e+00> : vector<8x128xf32>
    %242 = tpu.matmul %241, %3, %cst_78 {dimension_numbers = #tpu.dot_dimension_numbers<[1], [0], [0], [1], [0, 0, 1, 1], [], []>} : vector<8x32xbf16>, vector<32x128xbf16>, vector<8x128xf32> -> vector<8x128xf32>
    %243 = arith.addf %240, %242 : vector<8x128xf32>
    %244 = vector.extract_strided_slice %243 {offsets = [0, 0], sizes = [8, 32], strides = [1, 1]} : vector<8x128xf32> to vector<8x32xf32>
    %245 = arith.negf %244 : vector<8x32xf32>
    %246 = math.exp %245 : vector<8x32xf32>
    %cst_79 = arith.constant 1.000000e+00 : f32
    %247 = vector.broadcast %cst_79 : f32 to vector<8x32xf32>
    %248 = arith.addf %247, %246 : vector<8x32xf32>
    %249 = arith.divf %247, %248 : vector<8x32xf32>
    %250 = vector.extract_strided_slice %243 {offsets = [0, 32], sizes = [8, 32], strides = [1, 1]} : vector<8x128xf32> to vector<8x32xf32>
    %251 = arith.negf %250 : vector<8x32xf32>
    %252 = math.exp %251 : vector<8x32xf32>
    %cst_80 = arith.constant 1.000000e+00 : f32
    %253 = vector.broadcast %cst_80 : f32 to vector<8x32xf32>
    %254 = arith.addf %253, %252 : vector<8x32xf32>
    %255 = arith.divf %253, %254 : vector<8x32xf32>
    %256 = vector.extract_strided_slice %243 {offsets = [0, 64], sizes = [8, 32], strides = [1, 1]} : vector<8x128xf32> to vector<8x32xf32>
    %257 = math.tanh %256 : vector<8x32xf32>
    %258 = vector.extract_strided_slice %243 {offsets = [0, 96], sizes = [8, 32], strides = [1, 1]} : vector<8x128xf32> to vector<8x32xf32>
    %259 = arith.negf %258 : vector<8x32xf32>
    %260 = math.exp %259 : vector<8x32xf32>
    %cst_81 = arith.constant 1.000000e+00 : f32
    %261 = vector.broadcast %cst_81 : f32 to vector<8x32xf32>
    %262 = arith.addf %261, %260 : vector<8x32xf32>
    %263 = arith.divf %261, %262 : vector<8x32xf32>
    %264 = arith.mulf %255, %211 : vector<8x32xf32>
    %265 = arith.mulf %249, %257 : vector<8x32xf32>
    %266 = arith.addf %264, %265 : vector<8x32xf32>
    %267 = math.tanh %266 : vector<8x32xf32>
    %268 = arith.mulf %263, %267 : vector<8x32xf32>
    %269 = arith.truncf %268 : vector<8x32xf32> to vector<8x32xbf16>
    %cst_82 = arith.constant dense<0.000000e+00> : vector<8x128xf32>
    %270 = tpu.matmul %269, %4, %cst_82 {dimension_numbers = #tpu.dot_dimension_numbers<[1], [0], [0], [1], [0, 0, 1, 1], [], []>} : vector<8x32xbf16>, vector<32x128xbf16>, vector<8x128xf32> -> vector<8x128xf32>
    %271 = vector.broadcast %5 : vector<1x128xf32> to vector<8x128xf32>
    %272 = arith.addf %270, %271 : vector<8x128xf32>
    %273 = arith.index_cast %c4_i32 : i32 to index
    %c0_83 = arith.constant 0 : index
    %c0_84 = arith.constant 0 : index
    %274 = vector.load %arg2[%273, %c0_83, %c0_84] : memref<8x8x128xf32, #tpu.memory_space<vmem>>, vector<1x8x128xf32>
    %275 = vector.shape_cast %274 : vector<1x8x128xf32> to vector<8x128xf32>
    %276 = arith.addf %272, %275 : vector<8x128xf32>
    %cst_85 = arith.constant dense<0xFF800000> : vector<8xf32>
    %277 = vector.multi_reduction <maximumf>, %276, %cst_85 [1] : vector<8x128xf32> to vector<8xf32>
    %278 = vector.shape_cast %277 : vector<8xf32> to vector<8x1xf32>
    %279 = vector.broadcast %278 : vector<8x1xf32> to vector<8x128xf32>
    %280 = arith.cmpf oge, %276, %279 : vector<8x128xf32>
    %c128_i32_86 = arith.constant 128 : i32
    %281 = vector.broadcast %c128_i32_86 : i32 to vector<8x128xi32>
    %282 = arith.select %280, %6, %281 : vector<8x128xi1>, vector<8x128xi32>
    %cst_87 = arith.constant dense<2147483647> : vector<8xi32>
    %283 = vector.multi_reduction <minsi>, %282, %cst_87 [1] : vector<8x128xi32> to vector<8xi32>
    %284 = vector.shape_cast %283 : vector<8xi32> to vector<8x1xi32>
    %285 = vector.broadcast %284 : vector<8x1xi32> to vector<8x128xi32>
    %286 = arith.cmpi eq, %6, %285 : vector<8x128xi32>
    %287 = arith.extui %286 : vector<8x128xi1> to vector<8x128xi32>
    %288 = arith.sitofp %287 : vector<8x128xi32> to vector<8x128xf32>
    %289 = arith.index_cast %c4_i32 : i32 to index
    %c0_88 = arith.constant 0 : index
    %c0_89 = arith.constant 0 : index
    %290 = vector.load %arg8[%289, %c0_88, %c0_89] : memref<8x8x128xf32, #tpu.memory_space<vmem>>, vector<1x8x128xf32>
    %291 = vector.shape_cast %290 : vector<1x8x128xf32> to vector<8x128xf32>
    %292 = vector.shape_cast %288 : vector<8x128xf32> to vector<1x8x128xf32>
    tpu.vector_store %arg8[%289, %c0_88, %c0_89], %292 {strides = array<i32>} : memref<8x8x128xf32, #tpu.memory_space<vmem>>, vector<1x8x128xf32>,
    %c5_i32 = arith.constant 5 : i32
    %293 = arith.index_cast %c5_i32 : i32 to index
    %c0_90 = arith.constant 0 : index
    %c0_91 = arith.constant 0 : index
    %294 = vector.load %arg11[%293, %c0_90, %c0_91] : memref<8x8x128xf32, #tpu.memory_space<vmem>>, vector<1x8x128xf32>
    %295 = vector.shape_cast %294 : vector<1x8x128xf32> to vector<8x128xf32>
    %296 = arith.truncf %268 : vector<8x32xf32> to vector<8x32xbf16>
    %cst_92 = arith.constant dense<0.000000e+00> : vector<8x128xf32>
    %297 = tpu.matmul %296, %3, %cst_92 {dimension_numbers = #tpu.dot_dimension_numbers<[1], [0], [0], [1], [0, 0, 1, 1], [], []>} : vector<8x32xbf16>, vector<32x128xbf16>, vector<8x128xf32> -> vector<8x128xf32>
    %298 = arith.addf %295, %297 : vector<8x128xf32>
    %299 = vector.extract_strided_slice %298 {offsets = [0, 0], sizes = [8, 32], strides = [1, 1]} : vector<8x128xf32> to vector<8x32xf32>
    %300 = arith.negf %299 : vector<8x32xf32>
    %301 = math.exp %300 : vector<8x32xf32>
    %cst_93 = arith.constant 1.000000e+00 : f32
    %302 = vector.broadcast %cst_93 : f32 to vector<8x32xf32>
    %303 = arith.addf %302, %301 : vector<8x32xf32>
    %304 = arith.divf %302, %303 : vector<8x32xf32>
    %305 = vector.extract_strided_slice %298 {offsets = [0, 32], sizes = [8, 32], strides = [1, 1]} : vector<8x128xf32> to vector<8x32xf32>
    %306 = arith.negf %305 : vector<8x32xf32>
    %307 = math.exp %306 : vector<8x32xf32>
    %cst_94 = arith.constant 1.000000e+00 : f32
    %308 = vector.broadcast %cst_94 : f32 to vector<8x32xf32>
    %309 = arith.addf %308, %307 : vector<8x32xf32>
    %310 = arith.divf %308, %309 : vector<8x32xf32>
    %311 = vector.extract_strided_slice %298 {offsets = [0, 64], sizes = [8, 32], strides = [1, 1]} : vector<8x128xf32> to vector<8x32xf32>
    %312 = math.tanh %311 : vector<8x32xf32>
    %313 = vector.extract_strided_slice %298 {offsets = [0, 96], sizes = [8, 32], strides = [1, 1]} : vector<8x128xf32> to vector<8x32xf32>
    %314 = arith.negf %313 : vector<8x32xf32>
    %315 = math.exp %314 : vector<8x32xf32>
    %cst_95 = arith.constant 1.000000e+00 : f32
    %316 = vector.broadcast %cst_95 : f32 to vector<8x32xf32>
    %317 = arith.addf %316, %315 : vector<8x32xf32>
    %318 = arith.divf %316, %317 : vector<8x32xf32>
    %319 = arith.mulf %310, %266 : vector<8x32xf32>
    %320 = arith.mulf %304, %312 : vector<8x32xf32>
    %321 = arith.addf %319, %320 : vector<8x32xf32>
    %322 = math.tanh %321 : vector<8x32xf32>
    %323 = arith.mulf %318, %322 : vector<8x32xf32>
    %324 = arith.truncf %323 : vector<8x32xf32> to vector<8x32xbf16>
    %cst_96 = arith.constant dense<0.000000e+00> : vector<8x128xf32>
    %325 = tpu.matmul %324, %4, %cst_96 {dimension_numbers = #tpu.dot_dimension_numbers<[1], [0], [0], [1], [0, 0, 1, 1], [], []>} : vector<8x32xbf16>, vector<32x128xbf16>, vector<8x128xf32> -> vector<8x128xf32>
    %326 = vector.broadcast %5 : vector<1x128xf32> to vector<8x128xf32>
    %327 = arith.addf %325, %326 : vector<8x128xf32>
    %328 = arith.index_cast %c5_i32 : i32 to index
    %c0_97 = arith.constant 0 : index
    %c0_98 = arith.constant 0 : index
    %329 = vector.load %arg2[%328, %c0_97, %c0_98] : memref<8x8x128xf32, #tpu.memory_space<vmem>>, vector<1x8x128xf32>
    %330 = vector.shape_cast %329 : vector<1x8x128xf32> to vector<8x128xf32>
    %331 = arith.addf %327, %330 : vector<8x128xf32>
    %cst_99 = arith.constant dense<0xFF800000> : vector<8xf32>
    %332 = vector.multi_reduction <maximumf>, %331, %cst_99 [1] : vector<8x128xf32> to vector<8xf32>
    %333 = vector.shape_cast %332 : vector<8xf32> to vector<8x1xf32>
    %334 = vector.broadcast %333 : vector<8x1xf32> to vector<8x128xf32>
    %335 = arith.cmpf oge, %331, %334 : vector<8x128xf32>
    %c128_i32_100 = arith.constant 128 : i32
    %336 = vector.broadcast %c128_i32_100 : i32 to vector<8x128xi32>
    %337 = arith.select %335, %6, %336 : vector<8x128xi1>, vector<8x128xi32>
    %cst_101 = arith.constant dense<2147483647> : vector<8xi32>
    %338 = vector.multi_reduction <minsi>, %337, %cst_101 [1] : vector<8x128xi32> to vector<8xi32>
    %339 = vector.shape_cast %338 : vector<8xi32> to vector<8x1xi32>
    %340 = vector.broadcast %339 : vector<8x1xi32> to vector<8x128xi32>
    %341 = arith.cmpi eq, %6, %340 : vector<8x128xi32>
    %342 = arith.extui %341 : vector<8x128xi1> to vector<8x128xi32>
    %343 = arith.sitofp %342 : vector<8x128xi32> to vector<8x128xf32>
    %344 = arith.index_cast %c5_i32 : i32 to index
    %c0_102 = arith.constant 0 : index
    %c0_103 = arith.constant 0 : index
    %345 = vector.load %arg8[%344, %c0_102, %c0_103] : memref<8x8x128xf32, #tpu.memory_space<vmem>>, vector<1x8x128xf32>
    %346 = vector.shape_cast %345 : vector<1x8x128xf32> to vector<8x128xf32>
    %347 = vector.shape_cast %343 : vector<8x128xf32> to vector<1x8x128xf32>
    tpu.vector_store %arg8[%344, %c0_102, %c0_103], %347 {strides = array<i32>} : memref<8x8x128xf32, #tpu.memory_space<vmem>>, vector<1x8x128xf32>,
    %c6_i32 = arith.constant 6 : i32
    %348 = arith.index_cast %c6_i32 : i32 to index
    %c0_104 = arith.constant 0 : index
    %c0_105 = arith.constant 0 : index
    %349 = vector.load %arg11[%348, %c0_104, %c0_105] : memref<8x8x128xf32, #tpu.memory_space<vmem>>, vector<1x8x128xf32>
    %350 = vector.shape_cast %349 : vector<1x8x128xf32> to vector<8x128xf32>
    %351 = arith.truncf %323 : vector<8x32xf32> to vector<8x32xbf16>
    %cst_106 = arith.constant dense<0.000000e+00> : vector<8x128xf32>
    %352 = tpu.matmul %351, %3, %cst_106 {dimension_numbers = #tpu.dot_dimension_numbers<[1], [0], [0], [1], [0, 0, 1, 1], [], []>} : vector<8x32xbf16>, vector<32x128xbf16>, vector<8x128xf32> -> vector<8x128xf32>
    %353 = arith.addf %350, %352 : vector<8x128xf32>
    %354 = vector.extract_strided_slice %353 {offsets = [0, 0], sizes = [8, 32], strides = [1, 1]} : vector<8x128xf32> to vector<8x32xf32>
    %355 = arith.negf %354 : vector<8x32xf32>
    %356 = math.exp %355 : vector<8x32xf32>
    %cst_107 = arith.constant 1.000000e+00 : f32
    %357 = vector.broadcast %cst_107 : f32 to vector<8x32xf32>
    %358 = arith.addf %357, %356 : vector<8x32xf32>
    %359 = arith.divf %357, %358 : vector<8x32xf32>
    %360 = vector.extract_strided_slice %353 {offsets = [0, 32], sizes = [8, 32], strides = [1, 1]} : vector<8x128xf32> to vector<8x32xf32>
    %361 = arith.negf %360 : vector<8x32xf32>
    %362 = math.exp %361 : vector<8x32xf32>
    %cst_108 = arith.constant 1.000000e+00 : f32
    %363 = vector.broadcast %cst_108 : f32 to vector<8x32xf32>
    %364 = arith.addf %363, %362 : vector<8x32xf32>
    %365 = arith.divf %363, %364 : vector<8x32xf32>
    %366 = vector.extract_strided_slice %353 {offsets = [0, 64], sizes = [8, 32], strides = [1, 1]} : vector<8x128xf32> to vector<8x32xf32>
    %367 = math.tanh %366 : vector<8x32xf32>
    %368 = vector.extract_strided_slice %353 {offsets = [0, 96], sizes = [8, 32], strides = [1, 1]} : vector<8x128xf32> to vector<8x32xf32>
    %369 = arith.negf %368 : vector<8x32xf32>
    %370 = math.exp %369 : vector<8x32xf32>
    %cst_109 = arith.constant 1.000000e+00 : f32
    %371 = vector.broadcast %cst_109 : f32 to vector<8x32xf32>
    %372 = arith.addf %371, %370 : vector<8x32xf32>
    %373 = arith.divf %371, %372 : vector<8x32xf32>
    %374 = arith.mulf %365, %321 : vector<8x32xf32>
    %375 = arith.mulf %359, %367 : vector<8x32xf32>
    %376 = arith.addf %374, %375 : vector<8x32xf32>
    %377 = math.tanh %376 : vector<8x32xf32>
    %378 = arith.mulf %373, %377 : vector<8x32xf32>
    %379 = arith.truncf %378 : vector<8x32xf32> to vector<8x32xbf16>
    %cst_110 = arith.constant dense<0.000000e+00> : vector<8x128xf32>
    %380 = tpu.matmul %379, %4, %cst_110 {dimension_numbers = #tpu.dot_dimension_numbers<[1], [0], [0], [1], [0, 0, 1, 1], [], []>} : vector<8x32xbf16>, vector<32x128xbf16>, vector<8x128xf32> -> vector<8x128xf32>
    %381 = vector.broadcast %5 : vector<1x128xf32> to vector<8x128xf32>
    %382 = arith.addf %380, %381 : vector<8x128xf32>
    %383 = arith.index_cast %c6_i32 : i32 to index
    %c0_111 = arith.constant 0 : index
    %c0_112 = arith.constant 0 : index
    %384 = vector.load %arg2[%383, %c0_111, %c0_112] : memref<8x8x128xf32, #tpu.memory_space<vmem>>, vector<1x8x128xf32>
    %385 = vector.shape_cast %384 : vector<1x8x128xf32> to vector<8x128xf32>
    %386 = arith.addf %382, %385 : vector<8x128xf32>
    %cst_113 = arith.constant dense<0xFF800000> : vector<8xf32>
    %387 = vector.multi_reduction <maximumf>, %386, %cst_113 [1] : vector<8x128xf32> to vector<8xf32>
    %388 = vector.shape_cast %387 : vector<8xf32> to vector<8x1xf32>
    %389 = vector.broadcast %388 : vector<8x1xf32> to vector<8x128xf32>
    %390 = arith.cmpf oge, %386, %389 : vector<8x128xf32>
    %c128_i32_114 = arith.constant 128 : i32
    %391 = vector.broadcast %c128_i32_114 : i32 to vector<8x128xi32>
    %392 = arith.select %390, %6, %391 : vector<8x128xi1>, vector<8x128xi32>
    %cst_115 = arith.constant dense<2147483647> : vector<8xi32>
    %393 = vector.multi_reduction <minsi>, %392, %cst_115 [1] : vector<8x128xi32> to vector<8xi32>
    %394 = vector.shape_cast %393 : vector<8xi32> to vector<8x1xi32>
    %395 = vector.broadcast %394 : vector<8x1xi32> to vector<8x128xi32>
    %396 = arith.cmpi eq, %6, %395 : vector<8x128xi32>
    %397 = arith.extui %396 : vector<8x128xi1> to vector<8x128xi32>
    %398 = arith.sitofp %397 : vector<8x128xi32> to vector<8x128xf32>
    %399 = arith.index_cast %c6_i32 : i32 to index
    %c0_116 = arith.constant 0 : index
    %c0_117 = arith.constant 0 : index
    %400 = vector.load %arg8[%399, %c0_116, %c0_117] : memref<8x8x128xf32, #tpu.memory_space<vmem>>, vector<1x8x128xf32>
    %401 = vector.shape_cast %400 : vector<1x8x128xf32> to vector<8x128xf32>
    %402 = vector.shape_cast %398 : vector<8x128xf32> to vector<1x8x128xf32>
    tpu.vector_store %arg8[%399, %c0_116, %c0_117], %402 {strides = array<i32>} : memref<8x8x128xf32, #tpu.memory_space<vmem>>, vector<1x8x128xf32>,
    %c7_i32 = arith.constant 7 : i32
    %403 = arith.index_cast %c7_i32 : i32 to index
    %c0_118 = arith.constant 0 : index
    %c0_119 = arith.constant 0 : index
    %404 = vector.load %arg11[%403, %c0_118, %c0_119] : memref<8x8x128xf32, #tpu.memory_space<vmem>>, vector<1x8x128xf32>
    %405 = vector.shape_cast %404 : vector<1x8x128xf32> to vector<8x128xf32>
    %406 = arith.truncf %378 : vector<8x32xf32> to vector<8x32xbf16>
    %cst_120 = arith.constant dense<0.000000e+00> : vector<8x128xf32>
    %407 = tpu.matmul %406, %3, %cst_120 {dimension_numbers = #tpu.dot_dimension_numbers<[1], [0], [0], [1], [0, 0, 1, 1], [], []>} : vector<8x32xbf16>, vector<32x128xbf16>, vector<8x128xf32> -> vector<8x128xf32>
    %408 = arith.addf %405, %407 : vector<8x128xf32>
    %409 = vector.extract_strided_slice %408 {offsets = [0, 0], sizes = [8, 32], strides = [1, 1]} : vector<8x128xf32> to vector<8x32xf32>
    %410 = arith.negf %409 : vector<8x32xf32>
    %411 = math.exp %410 : vector<8x32xf32>
    %cst_121 = arith.constant 1.000000e+00 : f32
    %412 = vector.broadcast %cst_121 : f32 to vector<8x32xf32>
    %413 = arith.addf %412, %411 : vector<8x32xf32>
    %414 = arith.divf %412, %413 : vector<8x32xf32>
    %415 = vector.extract_strided_slice %408 {offsets = [0, 32], sizes = [8, 32], strides = [1, 1]} : vector<8x128xf32> to vector<8x32xf32>
    %416 = arith.negf %415 : vector<8x32xf32>
    %417 = math.exp %416 : vector<8x32xf32>
    %cst_122 = arith.constant 1.000000e+00 : f32
    %418 = vector.broadcast %cst_122 : f32 to vector<8x32xf32>
    %419 = arith.addf %418, %417 : vector<8x32xf32>
    %420 = arith.divf %418, %419 : vector<8x32xf32>
    %421 = vector.extract_strided_slice %408 {offsets = [0, 64], sizes = [8, 32], strides = [1, 1]} : vector<8x128xf32> to vector<8x32xf32>
    %422 = math.tanh %421 : vector<8x32xf32>
    %423 = vector.extract_strided_slice %408 {offsets = [0, 96], sizes = [8, 32], strides = [1, 1]} : vector<8x128xf32> to vector<8x32xf32>
    %424 = arith.negf %423 : vector<8x32xf32>
    %425 = math.exp %424 : vector<8x32xf32>
    %cst_123 = arith.constant 1.000000e+00 : f32
    %426 = vector.broadcast %cst_123 : f32 to vector<8x32xf32>
    %427 = arith.addf %426, %425 : vector<8x32xf32>
    %428 = arith.divf %426, %427 : vector<8x32xf32>
    %429 = arith.mulf %420, %376 : vector<8x32xf32>
    %430 = arith.mulf %414, %422 : vector<8x32xf32>
    %431 = arith.addf %429, %430 : vector<8x32xf32>
    %432 = math.tanh %431 : vector<8x32xf32>
    %433 = arith.mulf %428, %432 : vector<8x32xf32>
    %434 = arith.truncf %433 : vector<8x32xf32> to vector<8x32xbf16>
    %cst_124 = arith.constant dense<0.000000e+00> : vector<8x128xf32>
    %435 = tpu.matmul %434, %4, %cst_124 {dimension_numbers = #tpu.dot_dimension_numbers<[1], [0], [0], [1], [0, 0, 1, 1], [], []>} : vector<8x32xbf16>, vector<32x128xbf16>, vector<8x128xf32> -> vector<8x128xf32>
    %436 = vector.broadcast %5 : vector<1x128xf32> to vector<8x128xf32>
    %437 = arith.addf %435, %436 : vector<8x128xf32>
    %438 = arith.index_cast %c7_i32 : i32 to index
    %c0_125 = arith.constant 0 : index
    %c0_126 = arith.constant 0 : index
    %439 = vector.load %arg2[%438, %c0_125, %c0_126] : memref<8x8x128xf32, #tpu.memory_space<vmem>>, vector<1x8x128xf32>
    %440 = vector.shape_cast %439 : vector<1x8x128xf32> to vector<8x128xf32>
    %441 = arith.addf %437, %440 : vector<8x128xf32>
    %cst_127 = arith.constant dense<0xFF800000> : vector<8xf32>
    %442 = vector.multi_reduction <maximumf>, %441, %cst_127 [1] : vector<8x128xf32> to vector<8xf32>
    %443 = vector.shape_cast %442 : vector<8xf32> to vector<8x1xf32>
    %444 = vector.broadcast %443 : vector<8x1xf32> to vector<8x128xf32>
    %445 = arith.cmpf oge, %441, %444 : vector<8x128xf32>
    %c128_i32_128 = arith.constant 128 : i32
    %446 = vector.broadcast %c128_i32_128 : i32 to vector<8x128xi32>
    %447 = arith.select %445, %6, %446 : vector<8x128xi1>, vector<8x128xi32>
    %cst_129 = arith.constant dense<2147483647> : vector<8xi32>
    %448 = vector.multi_reduction <minsi>, %447, %cst_129 [1] : vector<8x128xi32> to vector<8xi32>
    %449 = vector.shape_cast %448 : vector<8xi32> to vector<8x1xi32>
    %450 = vector.broadcast %449 : vector<8x1xi32> to vector<8x128xi32>
    %451 = arith.cmpi eq, %6, %450 : vector<8x128xi32>
    %452 = arith.extui %451 : vector<8x128xi1> to vector<8x128xi32>
    %453 = arith.sitofp %452 : vector<8x128xi32> to vector<8x128xf32>
    %454 = arith.index_cast %c7_i32 : i32 to index
    %c0_130 = arith.constant 0 : index
    %c0_131 = arith.constant 0 : index
    %455 = vector.load %arg8[%454, %c0_130, %c0_131] : memref<8x8x128xf32, #tpu.memory_space<vmem>>, vector<1x8x128xf32>
    %456 = vector.shape_cast %455 : vector<1x8x128xf32> to vector<8x128xf32>
    %457 = vector.shape_cast %453 : vector<8x128xf32> to vector<1x8x128xf32>
    tpu.vector_store %arg8[%454, %c0_130, %c0_131], %457 {strides = array<i32>} : memref<8x8x128xf32, #tpu.memory_space<vmem>>, vector<1x8x128xf32>,
    %c8_i32 = arith.constant 8 : i32
    %c0_132 = arith.constant 0 : index
    %c0_133 = arith.constant 0 : index
    %458 = vector.load %arg9[%c0_132, %c0_133] : memref<8x32xf32, #tpu.memory_space<vmem>>, vector<8x32xf32>
    tpu.vector_store %arg9[%c0_132, %c0_133], %433 {strides = array<i32>} : memref<8x32xf32, #tpu.memory_space<vmem>>, vector<8x32xf32>,
    %c0_134 = arith.constant 0 : index
    %c0_135 = arith.constant 0 : index
    %459 = vector.load %arg10[%c0_134, %c0_135] : memref<8x32xf32, #tpu.memory_space<vmem>>, vector<8x32xf32>
    tpu.vector_store %arg10[%c0_134, %c0_135], %431 {strides = array<i32>} : memref<8x32xf32, #tpu.memory_space<vmem>>, vector<8x32xf32>,
    return
  }
  func.func @transform_0(%arg0: i32) -> (i32, i32, i32) {
    %c0_i32 = arith.constant 0 : i32
    %c0_i32_0 = arith.constant 0 : i32
    %c0_i32_1 = arith.constant 0 : i32
    return %arg0, %c0_i32, %c0_i32_0 : i32, i32, i32
  }
  func.func @transform_1(%arg0: i32) -> (i32, i32, i32) {
    %c0_i32 = arith.constant 0 : i32
    %c0_i32_0 = arith.constant 0 : i32
    %c0_i32_1 = arith.constant 0 : i32
    return %arg0, %c0_i32, %c0_i32_0 : i32, i32, i32
  }
  func.func @transform_2(%arg0: i32) -> (i32, i32) {
    %c0_i32 = arith.constant 0 : i32
    %c0_i32_0 = arith.constant 0 : i32
    %c0_i32_1 = arith.constant 0 : i32
    return %c0_i32, %c0_i32_0 : i32, i32
  }
  func.func @transform_3(%arg0: i32) -> (i32, i32) {
    %c0_i32 = arith.constant 0 : i32
    %c0_i32_0 = arith.constant 0 : i32
    %c0_i32_1 = arith.constant 0 : i32
    return %c0_i32, %c0_i32_0 : i32, i32
  }
  func.func @transform_4(%arg0: i32) -> (i32, i32) {
    %c0_i32 = arith.constant 0 : i32
    %c0_i32_0 = arith.constant 0 : i32
    %c0_i32_1 = arith.constant 0 : i32
    return %c0_i32, %c0_i32_0 : i32, i32
  }
  func.func @transform_5(%arg0: i32) -> (i32, i32) {
    %c0_i32 = arith.constant 0 : i32
    %c0_i32_0 = arith.constant 0 : i32
    %c0_i32_1 = arith.constant 0 : i32
    return %c0_i32, %c0_i32_0 : i32, i32
  }
  func.func @transform_6(%arg0: i32) -> (i32, i32) {
    %c0_i32 = arith.constant 0 : i32
    %c0_i32_0 = arith.constant 0 : i32
    %c0_i32_1 = arith.constant 0 : i32
    return %c0_i32, %c0_i32_0 : i32, i32
  }
  func.func @transform_7(%arg0: i32) -> (i32, i32, i32) {
    %c0_i32 = arith.constant 0 : i32
    %c0_i32_0 = arith.constant 0 : i32
    %c0_i32_1 = arith.constant 0 : i32
    return %arg0, %c0_i32, %c0_i32_0 : i32, i32, i32
  }
}

</mosaic_0001>

<llo_original>
// kernel: tpu_custom_call.1
$region0: #{tpu_custom_call.1}
  #allocation0 [shape = 'u32[]', space=smem, size = 0x4, offset = 0x4, fixed_abs, tag = 'smem constant byte address 0x4 - core index']
  #allocation1 [shape = 'u32[144,128]{1,0:T(1,128)}', space=vmem, size = 0x12000, scoped, tag = 'internal scratch']
  #allocation2 [shape = 'f32[8,32]{1,0:T(8,128)}', space=vmem, size = 0x1000, scoped, tag = 'scratch operand']
  #allocation3 [shape = 'f32[8,32]{1,0:T(8,128)}', space=vmem, size = 0x1000, scoped, tag = 'scratch operand']
  #allocation4 [shape = 'f32[8,8,128]{2,1,0:T(8,128)}', space=vmem, size = 0x8000, scoped, tag = 'scratch operand']
  %s0 = inlined_call_operand.hbm [shape: bf16[8,8,32], index: 0, kind: input, shape index: {}]
  %s1 = inlined_call_operand.hbm [shape: f32[8,8,128], index: 1, kind: input, shape index: {}]
  %s2 = inlined_call_operand.hbm [shape: bf16[32,128], index: 2, kind: input, shape index: {}]
  %s3 = inlined_call_operand.vmem [shape: f32[1,128], index: 3, kind: input, shape index: {}]
  %s4 = inlined_call_operand.hbm [shape: bf16[32,128], index: 4, kind: input, shape index: {}]
  %s5 = inlined_call_operand.vmem [shape: bf16[32,128], index: 5, kind: input, shape index: {}]
  %s6 = inlined_call_operand.vmem [shape: f32[1,128], index: 6, kind: input, shape index: {}]
  %s7 = inlined_call_operand.hbm [shape: f32[8,8,128], index: 7, kind: output, shape index: {}]
  %s8 = sld [smem:[#allocation0]]
  $region58: #{tpu_custom_call.1} parent=0
    _
  %s10 = ssub.s32 1, %s8
  %s11 = scalar_select 0, %s10, %s8
  $region1: #{tpu_custom_call.1} parent=0
    #allocation5 [shape = 'u8[16384]{0}', space=vmem, size = 0x4000, scoped, tag = 'input window, operand 0, single buffered']
    #allocation6 [shape = 's32[1]{0}', space=sflag, size = 0x4, scoped, tag = 'scoped memory for tpu_custom_call.1']
    #allocation7 [shape = 's32[1]{0}', space=sflag, size = 0x4, scoped, tag = 'scoped memory for tpu_custom_call.1']
    #allocation8 [shape = 'u8[32768]{0}', space=vmem, size = 0x8000, scoped, tag = 'input window, operand 1, single buffered']
    #allocation9 [shape = 's32[1]{0}', space=sflag, size = 0x4, scoped, tag = 'scoped memory for tpu_custom_call.1']
    #allocation10 [shape = 'u8[8192]{0}', space=vmem, size = 0x2000, scoped, tag = 'input window, operand 2, single buffered']
    #allocation11 [shape = 'u8[8192]{0}', space=vmem, size = 0x2000, scoped, tag = 'input window, operand 4, single buffered']
    #allocation12 [shape = 's32[1]{0}', space=sflag, size = 0x4, scoped, tag = 'scoped memory for tpu_custom_call.1']
    #allocation13 [shape = 'u8[32768]{0}', space=vmem, size = 0x8000, scoped, tag = 'output window, operand 0, single buffered']
    %12 = vsyncpa [#allocation6], 0
    %13 = vsyncpa [#allocation9], 0
    %14 = vsyncpa [#allocation12], 0
    %15 = vsyncpa [#allocation7], 0
    // Predicated region
    $region2: #{tpu_custom_call.1} parent=1 // pred_check
      _
    $region3: #{tpu_custom_call.1} parent=1 // pred_check_branch
      %17 = sbr.rel (0) target = $region5
    $region4: #{tpu_custom_call.1} parent=1 // pred_region
      %s19 = ssub.s32 512, 512
      %20 = vsyncadd [#allocation6], %s19
      %s21 = sshll.u32 [#allocation5], 4
      %s22 = int_to_ptr.vmem [resolvable:$true] %s21
      %27 = dma.hbm_to_vmem [thread:$0]  %s0, 512, %s22, [#allocation6], 64, 64, 4
    $region5: #{tpu_custom_call.1} parent=1 // pred_fallthru
      _
    // Predicated region
    $region6: #{tpu_custom_call.1} parent=1 // pred_check
      _
    $region7: #{tpu_custom_call.1} parent=1 // pred_check_branch
      %29 = sbr.rel (0) target = $region9
    $region8: #{tpu_custom_call.1} parent=1 // pred_region
      %s31 = ssub.s32 1024, 1024
      %32 = vsyncadd [#allocation9], %s31
      %s33 = sshll.u32 [#allocation8], 4
      %s34 = int_to_ptr.vmem [resolvable:$true] %s33
      %39 = dma.hbm_to_vmem [thread:$0]  %s1, 1024, %s34, [#allocation9], 128, 128, 8
    $region9: #{tpu_custom_call.1} parent=1 // pred_fallthru
      _
    // Predicated region
    $region10: #{tpu_custom_call.1} parent=1 // pred_check
      _
    $region11: #{tpu_custom_call.1} parent=1 // pred_check_branch
      %41 = sbr.rel (0) target = $region13
    $region12: #{tpu_custom_call.1} parent=1 // pred_region
      %s43 = ssub.s32 256, 256
      %44 = vsyncadd [#allocation9], %s43
      %s45 = sshll.u32 [#allocation10], 4
      %s46 = int_to_ptr.vmem [resolvable:$true] %s45
      %51 = dma.hbm_to_vmem [thread:$0]  %s2, 256, %s46, [#allocation9], 64, 64, 4
    $region13: #{tpu_custom_call.1} parent=1 // pred_fallthru
      _
    // Predicated region
    $region14: #{tpu_custom_call.1} parent=1 // pred_check
      _
    $region15: #{tpu_custom_call.1} parent=1 // pred_check_branch
      %53 = sbr.rel (0) target = $region17
    $region16: #{tpu_custom_call.1} parent=1 // pred_region
      _
    $region17: #{tpu_custom_call.1} parent=1 // pred_fallthru
      _
    // Predicated region
    $region18: #{tpu_custom_call.1} parent=1 // pred_check
      _
    $region19: #{tpu_custom_call.1} parent=1 // pred_check_branch
      %55 = sbr.rel (0) target = $region21
    $region20: #{tpu_custom_call.1} parent=1 // pred_region
      %s57 = ssub.s32 256, 256
      %58 = vsyncadd [#allocation12], %s57
      %s59 = sshll.u32 [#allocation11], 4
      %s60 = int_to_ptr.vmem [resolvable:$true] %s59
      %65 = dma.hbm_to_vmem [thread:$0]  %s4, 256, %s60, [#allocation12], 64, 64, 4
    $region21: #{tpu_custom_call.1} parent=1 // pred_fallthru
      _
    // Predicated region
    $region22: #{tpu_custom_call.1} parent=1 // pred_check
      _
    $region23: #{tpu_custom_call.1} parent=1 // pred_check_branch
      %67 = sbr.rel (0) target = $region25
    $region24: #{tpu_custom_call.1} parent=1 // pred_region
      _
    $region25: #{tpu_custom_call.1} parent=1 // pred_fallthru
      _
    // Predicated region
    $region26: #{tpu_custom_call.1} parent=1 // pred_check
      _
    $region27: #{tpu_custom_call.1} parent=1 // pred_check_branch
      %69 = sbr.rel (0) target = $region29
    $region28: #{tpu_custom_call.1} parent=1 // pred_region
      _
    $region29: #{tpu_custom_call.1} parent=1 // pred_fallthru
      _
    // Predicated region
    $region30: #{tpu_custom_call.1} parent=1 // pred_check
      _
    $region31: #{tpu_custom_call.1} parent=1 // pred_check_branch
      %71 = sbr.rel (0) target = $region33
    $region32: #{tpu_custom_call.1} parent=1 // pred_region
      %72 = dma.done [#allocation6], 512
    $region33: #{tpu_custom_call.1} parent=1 // pred_fallthru
      _
    // Predicated region
    $region34: #{tpu_custom_call.1} parent=1 // pred_check
      _
    $region35: #{tpu_custom_call.1} parent=1 // pred_check_branch
      %74 = sbr.rel (0) target = $region37
    $region36: #{tpu_custom_call.1} parent=1 // pred_region
      %75 = dma.done [#allocation9], 1024
    $region37: #{tpu_custom_call.1} parent=1 // pred_fallthru
      _
    // Predicated region
    $region38: #{tpu_custom_call.1} parent=1 // pred_check
      _
    $region39: #{tpu_custom_call.1} parent=1 // pred_check_branch
      %77 = sbr.rel (0) target = $region41
    $region40: #{tpu_custom_call.1} parent=1 // pred_region
      %78 = dma.done [#allocation9], 256
    $region41: #{tpu_custom_call.1} parent=1 // pred_fallthru
      _
    // Predicated region
    $region42: #{tpu_custom_call.1} parent=1 // pred_check
      _
    $region43: #{tpu_custom_call.1} parent=1 // pred_check_branch
      %80 = sbr.rel (0) target = $region45
    $region44: #{tpu_custom_call.1} parent=1 // pred_region
      %81 = dma.done [#allocation12], 256
    $region45: #{tpu_custom_call.1} parent=1 // pred_fallthru
      _
    %p83 = scmp.eq.s32.totalorder 0, 0
    // Predicated region
    $region46: #{tpu_custom_call.1} parent=1 // pred_check
      %p84 = pneg %p83
    $region47: #{tpu_custom_call.1} parent=1 // pred_check_branch
      %86 = sbr.rel (%p84) target = $region49
    $region48: #{tpu_custom_call.1} parent=1 // pred_region
      %vm87 = vcmask 261120
      %88 = vst.msk [vmem:[#allocation2] sm:$0xff] %vm87, 0.0
      %89 = vst.msk [vmem:[#allocation3] sm:$0xff] %vm87, 0.0
    $region49: #{tpu_custom_call.1} parent=1 // pred_fallthru
      _
    %v90 = vld [vmem:[#allocation11] sm:$0xf]
    %v91 = vld [vmem:[#allocation11 + $0x4] sm:$0xf]
    %v92 = vld [vmem:[#allocation11 + $0x8] sm:$0xf]
    %v93 = vld [vmem:[#allocation11 + $0xc] sm:$0xf]
    %v94 = vld [vmem:[%s5] sm:$0xf]
    %v95 = vld [vmem:[%s5 + $0x4] sm:$0xf]
    %v96 = vld [vmem:[%s5 + $0x8] sm:$0xf]
    %v97 = vld [vmem:[%s5 + $0xc] sm:$0xf]
    %v98 = vld [vmem:[%s6] sm:$0x1]
    %v99 = vlaneseq
    %v100 = vand.u32 %v99, 127
    %v101 = vld [vmem:[#allocation5] sm:$0xf]
    %v102 = vld [vmem:[#allocation5 + $0x4] sm:$0xf]
    %v103 = vld [vmem:[#allocation5 + $0x8] sm:$0xf]
    %v104 = vld [vmem:[#allocation5 + $0xc] sm:$0xf]
    %v105 = vld [vmem:[#allocation5 + $0x10] sm:$0xf]
    %v106 = vld [vmem:[#allocation5 + $0x14] sm:$0xf]
    %v107 = vld [vmem:[#allocation5 + $0x18] sm:$0xf]
    %v108 = vld [vmem:[#allocation5 + $0x1c] sm:$0xf]
    %v109 = vld [vmem:[#allocation10] sm:$0xf]
    %v110 = vld [vmem:[#allocation10 + $0x4] sm:$0xf]
    %v111 = vld [vmem:[#allocation10 + $0x8] sm:$0xf]
    %v112 = vld [vmem:[#allocation10 + $0xc] sm:$0xf]
    %v113 = vld [vmem:[%s3] sm:$0x1]
    %v115 = vlaneseq
    %v116 = vshrl.u32 %v115, 7
    %v117 = vsub.s32 0, %v116
    %v118 = vrot.slane %v113, %v117
    %v128 = vunpack.c.l.b16 %v101
    %v129 = vunpack.c.l.b16 %v102
    %v130 = vunpack.c.l.b16 %v103
    %v131 = vunpack.c.l.b16 %v104
    %v132 = vunpack.c.l.b16 %v105
    %v133 = vunpack.c.l.b16 %v106
    %v134 = vunpack.c.l.b16 %v107
    %v135 = vunpack.c.l.b16 %v108
    %v136 = vpack.c.b16 %v129, %v128
    %v137 = vpack.c.b16 %v131, %v130
    %v138 = vpack.c.b16 %v133, %v132
    %v139 = vpack.c.b16 %v135, %v134
    %v144 = vunpack.c.l.b16 %v109
    %v145 = vunpack.c.l.b16 %v110
    %v146 = vunpack.c.l.b16 %v111
    %v147 = vunpack.c.l.b16 %v112
    %v148 = vpack.c.b16 %v145, %v144
    %v149 = vpack.c.b16 %v147, %v146
    %vm152 = vcmask 261120
    %v154 = vsel %vm152, %v136, 0
    %v157 = vsel %vm152, %v137, 0
    %v160 = vsel %vm152, %v138, 0
    %v163 = vsel %vm152, %v139, 0
    %165 = vmatprep.subr.bf16.mxu0 0
    %166 = vmatpush1.bf16.msra.mxu0 %v148
    %167 = vmatprep.subr.bf16.mxu0 0
    %168 = vmatpush1.bf16.msra.mxu0 %v149
    %169 = vmatprep.subr.bf16.mxu0 0
    %170 = vmatpush1.bf16.msra.mxu0 0
    %171 = vmatprep.subr.bf16.mxu0 0
    %172 = vmatpush1.bf16.msra.mxu0 0
    %173 = vmatprep.subr.bf16.mxu0 0
    %174 = vmatpush1.bf16.msra.mxu0 0
    %175 = vmatprep.subr.bf16.mxu0 0
    %176 = vmatpush1.bf16.msra.mxu0 0
    %177 = vmatprep.subr.bf16.mxu0 0
    %178 = vmatpush1.bf16.msra.mxu0 0
    %179 = vmatprep.subr.bf16.mxu0 0
    %180 = vmatpush1.bf16.msra.mxu0 0
    %181 = vmatprep.subr.bf16.mxu0 0
    %182 = vmatpush1.bf16.msra.mxu0 0
    %183 = vmatprep.subr.bf16.mxu0 0
    %184 = vmatpush1.bf16.msra.mxu0 0
    %185 = vmatprep.subr.bf16.mxu0 0
    %186 = vmatpush1.bf16.msra.mxu0 0
    %187 = vmatprep.subr.bf16.mxu0 0
    %188 = vmatpush1.bf16.msra.mxu0 0
    %189 = vmatprep.subr.bf16.mxu0 0
    %190 = vmatpush1.bf16.msra.mxu0 0
    %191 = vmatprep.subr.bf16.mxu0 0
    %192 = vmatpush1.bf16.msra.mxu0 0
    %193 = vmatprep.subr.bf16.mxu0 0
    %194 = vmatpush1.bf16.msra.mxu0 0
    %195 = vmatprep.subr.bf16.mxu0 0
    %196 = vmatpush1.bf16.msra.mxu0 0
    %197 = vmatprep.mubr.bf16.mxu0 0
    %198 = vmatmul.mubr.bf16.gmra.mrb[0].mxu0 %v154
    %v199 = vpop.f32.mrb[0].mxu0
    %v200 = vadd.f32 %v118, %v199
    %v201 = vpop.f32.mrb[0].mxu0
    %v202 = vpop.f32.mrb[0].mxu0
    %v203 = vadd.f32 %v118, %v202
    %v204 = vpop.f32.mrb[0].mxu0
    %205 = vmatprep.mubr.bf16.mxu0 0
    %206 = vmatmul.mubr.bf16.gmra.mrb[0].mxu0 %v157
    %v207 = vpop.f32.mrb[0].mxu0
    %v208 = vadd.f32 %v118, %v207
    %v209 = vpop.f32.mrb[0].mxu0
    %v210 = vpop.f32.mrb[0].mxu0
    %v211 = vadd.f32 %v118, %v210
    %v212 = vpop.f32.mrb[0].mxu0
    %213 = vmatprep.mubr.bf16.mxu0 0
    %214 = vmatmul.mubr.bf16.gmra.mrb[0].mxu0 %v160
    %v215 = vpop.f32.mrb[0].mxu0
    %v216 = vadd.f32 %v118, %v215
    %v217 = vpop.f32.mrb[0].mxu0
    %v218 = vpop.f32.mrb[0].mxu0
    %v219 = vadd.f32 %v118, %v218
    %v220 = vpop.f32.mrb[0].mxu0
    %221 = vmatprep.mubr.bf16.mxu0 0
    %222 = vmatmul.mubr.bf16.gmra.mrb[0].mxu0 %v163
    %v223 = vpop.f32.mrb[0].mxu0
    %v224 = vadd.f32 %v118, %v223
    %v225 = vpop.f32.mrb[0].mxu0
    %v226 = vpop.f32.mrb[0].mxu0
    %v227 = vadd.f32 %v118, %v226
    %v228 = vpop.f32.mrb[0].mxu0
    %229 = vdwg.mxu0
    %230 = vst [vmem:[#allocation4] sm:$0xff] %v200
    %231 = vst [vmem:[#allocation4 + $0x8] sm:$0xff] %v203
    %232 = vst [vmem:[#allocation4 + $0x10] sm:$0xff] %v208
    %233 = vst [vmem:[#allocation4 + $0x18] sm:$0xff] %v211
    %234 = vst [vmem:[#allocation4 + $0x20] sm:$0xff] %v216
    %235 = vst [vmem:[#allocation4 + $0x28] sm:$0xff] %v219
    %236 = vst [vmem:[#allocation4 + $0x30] sm:$0xff] %v224
    %237 = vst [vmem:[#allocation4 + $0x38] sm:$0xff] %v227
    %v238 = vld [vmem:[#allocation2] sm:$0xff]
    %v239 = vld [vmem:[#allocation3] sm:$0xff]
    %v240 = vld [vmem:[#allocation4] sm:$0xff]
    %v241 = vpack.c.bf16 %v238, %v238
    %v246 = vunpack.c.l.b16 %v90
    %v247 = vunpack.c.l.b16 %v91
    %v248 = vunpack.c.l.b16 %v92
    %v249 = vunpack.c.l.b16 %v93
    %v250 = vpack.c.b16 %v247, %v246
    %v251 = vpack.c.b16 %v249, %v248
    %v255 = vsel %vm152, %v241, 0
    %257 = vmatprep.subr.bf16.mxu0 0
    %258 = vmatpush1.bf16.msra.mxu0 %v250
    %259 = vmatprep.subr.bf16.mxu0 0
    %260 = vmatpush1.bf16.msra.mxu0 %v251
    %261 = vmatprep.subr.bf16.mxu0 0
    %262 = vmatpush1.bf16.msra.mxu0 0
    %263 = vmatprep.subr.bf16.mxu0 0
    %264 = vmatpush1.bf16.msra.mxu0 0
    %265 = vmatprep.subr.bf16.mxu0 0
    %266 = vmatpush1.bf16.msra.mxu0 0
    %267 = vmatprep.subr.bf16.mxu0 0
    %268 = vmatpush1.bf16.msra.mxu0 0
    %269 = vmatprep.subr.bf16.mxu0 0
    %270 = vmatpush1.bf16.msra.mxu0 0
    %271 = vmatprep.subr.bf16.mxu0 0
    %272 = vmatpush1.bf16.msra.mxu0 0
    %273 = vmatprep.subr.bf16.mxu0 0
    %274 = vmatpush1.bf16.msra.mxu0 0
    %275 = vmatprep.subr.bf16.mxu0 0
    %276 = vmatpush1.bf16.msra.mxu0 0
    %277 = vmatprep.subr.bf16.mxu0 0
    %278 = vmatpush1.bf16.msra.mxu0 0
    %279 = vmatprep.subr.bf16.mxu0 0
    %280 = vmatpush1.bf16.msra.mxu0 0
    %281 = vmatprep.subr.bf16.mxu0 0
    %282 = vmatpush1.bf16.msra.mxu0 0
    %283 = vmatprep.subr.bf16.mxu0 0
    %284 = vmatpush1.bf16.msra.mxu0 0
    %285 = vmatprep.subr.bf16.mxu0 0
    %286 = vmatpush1.bf16.msra.mxu0 0
    %287 = vmatprep.subr.bf16.mxu0 0
    %288 = vmatpush1.bf16.msra.mxu0 0
    %289 = vmatprep.mubr.bf16.mxu0 0
    %290 = vmatmul.mubr.bf16.gmra.mrb[0].mxu0 %v255
    %v291 = vpop.f32.mrb[0].mxu0
    %v292 = vadd.f32 0.0, %v291
    %v293 = vpop.f32.mrb[0].mxu0
    %v294 = vpop.f32.mrb[0].mxu0
    %v295 = vpop.f32.mrb[0].mxu0
    %296 = vdwg.mxu0
    %v297 = vadd.f32 %v240, %v292
    %v298 = vxor.u32 %v297, 2147483648
    %v299 = vmul.f32 %v298, 1.442695
    %v300 = vpow.pop %v299
    %v301 = vadd.f32 %v300, 1.0
    %v302 = vrcp.pop %v301
    %v303 = vmul.f32 1.0, %v302
    %v304 = vtanh.pop %v297
    %306 = vrot.lane.b32.xlu0 %v239, 32
    %v307 = vpop.permute.xlu0 %306
    %v309 = vmul.f32 %v303, %v307
    %311 = vrot.lane.b32.xlu0 %v304, 64
    %v312 = vpop.permute.xlu0 %311
    %v314 = vmul.f32 %v303, %v312
    %316 = vrot.lane.b32.xlu0 %v314, 32
    %v317 = vpop.permute.xlu0 %316
    %v319 = vadd.f32 %v309, %v317
    %v320 = vtanh.pop %v319
    %322 = vrot.lane.b32.xlu0 %v320, 64
    %v323 = vpop.permute.xlu0 %322
    %v325 = vmul.f32 %v303, %v323
    %v326 = vpack.c.bf16 %v325, %v325
    %v328 = vlaneseq
    %v329 = vshrl.u32 %v328, 7
    %v330 = vsub.s32 0, %v329
    %v331 = vrot.slane %v98, %v330
    %334 = vrot.lane.b32.xlu0 %v326, 32
    %v335 = vpop.permute.xlu0 %334
    %v340 = vunpack.c.l.b16 %v94
    %v341 = vunpack.c.l.b16 %v95
    %v342 = vunpack.c.l.b16 %v96
    %v343 = vunpack.c.l.b16 %v97
    %v344 = vpack.c.b16 %v341, %v340
    %v345 = vpack.c.b16 %v343, %v342
    %v349 = vsel %vm152, %v335, 0
    %351 = vmatprep.subr.bf16.mxu0 0
    %352 = vmatpush1.bf16.msra.mxu0 %v344
    %353 = vmatprep.subr.bf16.mxu0 0
    %354 = vmatpush1.bf16.msra.mxu0 %v345
    %355 = vmatprep.subr.bf16.mxu0 0
    %356 = vmatpush1.bf16.msra.mxu0 0
    %357 = vmatprep.subr.bf16.mxu0 0
    %358 = vmatpush1.bf16.msra.mxu0 0
    %359 = vmatprep.subr.bf16.mxu0 0
    %360 = vmatpush1.bf16.msra.mxu0 0
    %361 = vmatprep.subr.bf16.mxu0 0
    %362 = vmatpush1.bf16.msra.mxu0 0
    %363 = vmatprep.subr.bf16.mxu0 0
    %364 = vmatpush1.bf16.msra.mxu0 0
    %365 = vmatprep.subr.bf16.mxu0 0
    %366 = vmatpush1.bf16.msra.mxu0 0
    %367 = vmatprep.subr.bf16.mxu0 0
    %368 = vmatpush1.bf16.msra.mxu0 0
    %369 = vmatprep.subr.bf16.mxu0 0
    %370 = vmatpush1.bf16.msra.mxu0 0
    %371 = vmatprep.subr.bf16.mxu0 0
    %372 = vmatpush1.bf16.msra.mxu0 0
    %373 = vmatprep.subr.bf16.mxu0 0
    %374 = vmatpush1.bf16.msra.mxu0 0
    %375 = vmatprep.subr.bf16.mxu0 0
    %376 = vmatpush1.bf16.msra.mxu0 0
    %377 = vmatprep.subr.bf16.mxu0 0
    %378 = vmatpush1.bf16.msra.mxu0 0
    %379 = vmatprep.subr.bf16.mxu0 0
    %380 = vmatpush1.bf16.msra.mxu0 0
    %381 = vmatprep.subr.bf16.mxu0 0
    %382 = vmatpush1.bf16.msra.mxu0 0
    %383 = vmatprep.mubr.bf16.mxu0 0
    %384 = vmatmul.mubr.bf16.gmra.mrb[0].mxu0 %v349
    %v385 = vpop.f32.mrb[0].mxu0
    %v386 = vadd.f32 %v331, %v385
    %v387 = vpop.f32.mrb[0].mxu0
    %v388 = vpop.f32.mrb[0].mxu0
    %v389 = vpop.f32.mrb[0].mxu0
    %390 = vdwg.mxu0
    %v391 = vld [vmem:[#allocation8] sm:$0xff]
    %v392 = vadd.f32 %v386, %v391
    %393 = vmax.xlane.f32.xlu0 %v392
    %v394 = vpop.xlane.xlu0 %393
    %vm395 = vcmp.ge.f32.partialorder %v392, %v394
    %v396 = vsel %vm395, %v100, 128
    %v397 = vand.u32 %v396, 65535
    %v398 = vshra.s32 %v396, 16
    %v399 = vcvt.s32.f32 %v397
    %v400 = vcvt.s32.f32 %v398
    %401 = vmin.xlane.f32.xlu0 %v400
    %v402 = vpop.xlane.xlu0 %401
    %vm403 = vcmp.eq.f32.partialorder %v400, %v402
    %v404 = vsel %vm403, %v399, inf
    %405 = vmin.xlane.f32.xlu0 %v404
    %v406 = vpop.xlane.xlu0 %405
    %v407 = vcvt.f32.s32 %v406
    %v408 = vcvt.f32.s32 %v402
    %v409 = vshll.u32 %v408, 16
    %v410 = vadd.s32 %v409, %v407
    %vm411 = vcmp.eq.s32.totalorder %v100, %v410
    %v412 = vsel %vm411, 1, 0
    %v413 = vcvt.s32.f32 %v412
    %414 = vst [vmem:[#allocation13] sm:$0xff] %v413
    %s415 = scalar_lea.vmem [#allocation4], 8
    %v416 = vld [vmem:[%s415] sm:$0xff]
    %417 = vmatprep.subr.bf16.mxu0 0
    %418 = vmatpush1.bf16.msra.mxu0 %v250
    %419 = vmatprep.subr.bf16.mxu0 0
    %420 = vmatpush1.bf16.msra.mxu0 %v251
    %421 = vmatprep.subr.bf16.mxu0 0
    %422 = vmatpush1.bf16.msra.mxu0 0
    %423 = vmatprep.subr.bf16.mxu0 0
    %424 = vmatpush1.bf16.msra.mxu0 0
    %425 = vmatprep.subr.bf16.mxu0 0
    %426 = vmatpush1.bf16.msra.mxu0 0
    %427 = vmatprep.subr.bf16.mxu0 0
    %428 = vmatpush1.bf16.msra.mxu0 0
    %429 = vmatprep.subr.bf16.mxu0 0
    %430 = vmatpush1.bf16.msra.mxu0 0
    %431 = vmatprep.subr.bf16.mxu0 0
    %432 = vmatpush1.bf16.msra.mxu0 0
    %433 = vmatprep.subr.bf16.mxu0 0
    %434 = vmatpush1.bf16.msra.mxu0 0
    %435 = vmatprep.subr.bf16.mxu0 0
    %436 = vmatpush1.bf16.msra.mxu0 0
    %437 = vmatprep.subr.bf16.mxu0 0
    %438 = vmatpush1.bf16.msra.mxu0 0
    %439 = vmatprep.subr.bf16.mxu0 0
    %440 = vmatpush1.bf16.msra.mxu0 0
    %441 = vmatprep.subr.bf16.mxu0 0
    %442 = vmatpush1.bf16.msra.mxu0 0
    %443 = vmatprep.subr.bf16.mxu0 0
    %444 = vmatpush1.bf16.msra.mxu0 0
    %445 = vmatprep.subr.bf16.mxu0 0
    %446 = vmatpush1.bf16.msra.mxu0 0
    %447 = vmatprep.subr.bf16.mxu0 0
    %448 = vmatpush1.bf16.msra.mxu0 0
    %449 = vmatprep.mubr.bf16.mxu0 0
    %450 = vmatmul.mubr.bf16.gmra.mrb[0].mxu0 %v349
    %v451 = vpop.f32.mrb[0].mxu0
    %v452 = vadd.f32 0.0, %v451
    %v453 = vpop.f32.mrb[0].mxu0
    %v454 = vpop.f32.mrb[0].mxu0
    %v455 = vpop.f32.mrb[0].mxu0
    %456 = vdwg.mxu0
    %v457 = vadd.f32 %v416, %v452
    %v458 = vxor.u32 %v457, 2147483648
    %v459 = vmul.f32 %v458, 1.442695
    %v460 = vpow.pop %v459
    %v461 = vadd.f32 %v460, 1.0
    %v462 = vrcp.pop %v461
    %v463 = vmul.f32 1.0, %v462
    %v464 = vtanh.pop %v457
    %v465 = vmul.f32 %v463, %v319
    %467 = vrot.lane.b32.xlu0 %v464, 64
    %v468 = vpop.permute.xlu0 %467
    %v470 = vmul.f32 %v463, %v468
    %472 = vrot.lane.b32.xlu0 %v470, 32
    %v473 = vpop.permute.xlu0 %472
    %v475 = vadd.f32 %v465, %v473
    %v476 = vtanh.pop %v475
    %478 = vrot.lane.b32.xlu0 %v476, 64
    %v479 = vpop.permute.xlu0 %478
    %v481 = vmul.f32 %v463, %v479
    %v482 = vpack.c.bf16 %v481, %v481
    %484 = vrot.lane.b32.xlu0 %v482, 32
    %v485 = vpop.permute.xlu0 %484
    %v487 = vsel %vm152, %v485, 0
    %489 = vmatprep.subr.bf16.mxu0 0
    %490 = vmatpush1.bf16.msra.mxu0 %v344
    %491 = vmatprep.subr.bf16.mxu0 0
    %492 = vmatpush1.bf16.msra.mxu0 %v345
    %493 = vmatprep.subr.bf16.mxu0 0
    %494 = vmatpush1.bf16.msra.mxu0 0
    %495 = vmatprep.subr.bf16.mxu0 0
    %496 = vmatpush1.bf16.msra.mxu0 0
    %497 = vmatprep.subr.bf16.mxu0 0
    %498 = vmatpush1.bf16.msra.mxu0 0
    %499 = vmatprep.subr.bf16.mxu0 0
    %500 = vmatpush1.bf16.msra.mxu0 0
    %501 = vmatprep.subr.bf16.mxu0 0
    %502 = vmatpush1.bf16.msra.mxu0 0
    %503 = vmatprep.subr.bf16.mxu0 0
    %504 = vmatpush1.bf16.msra.mxu0 0
    %505 = vmatprep.subr.bf16.mxu0 0
    %506 = vmatpush1.bf16.msra.mxu0 0
    %507 = vmatprep.subr.bf16.mxu0 0
    %508 = vmatpush1.bf16.msra.mxu0 0
    %509 = vmatprep.subr.bf16.mxu0 0
    %510 = vmatpush1.bf16.msra.mxu0 0
    %511 = vmatprep.subr.bf16.mxu0 0
    %512 = vmatpush1.bf16.msra.mxu0 0
    %513 = vmatprep.subr.bf16.mxu0 0
    %514 = vmatpush1.bf16.msra.mxu0 0
    %515 = vmatprep.subr.bf16.mxu0 0
    %516 = vmatpush1.bf16.msra.mxu0 0
    %517 = vmatprep.subr.bf16.mxu0 0
    %518 = vmatpush1.bf16.msra.mxu0 0
    %519 = vmatprep.subr.bf16.mxu0 0
    %520 = vmatpush1.bf16.msra.mxu0 0
    %521 = vmatprep.mubr.bf16.mxu0 0
    %522 = vmatmul.mubr.bf16.gmra.mrb[0].mxu0 %v487
    %v523 = vpop.f32.mrb[0].mxu0
    %v524 = vadd.f32 %v331, %v523
    %v525 = vpop.f32.mrb[0].mxu0
    %v526 = vpop.f32.mrb[0].mxu0
    %v527 = vpop.f32.mrb[0].mxu0
    %528 = vdwg.mxu0
    %s529 = scalar_lea.vmem [#allocation8], 8
    %v530 = vld [vmem:[%s529] sm:$0xff]
    %v531 = vadd.f32 %v524, %v530
    %532 = vmax.xlane.f32.xlu0 %v531
    %v533 = vpop.xlane.xlu0 %532
    %vm534 = vcmp.ge.f32.partialorder %v531, %v533
    %v535 = vsel %vm534, %v100, 128
    %v536 = vand.u32 %v535, 65535
    %v537 = vshra.s32 %v535, 16
    %v538 = vcvt.s32.f32 %v536
    %v539 = vcvt.s32.f32 %v537
    %540 = vmin.xlane.f32.xlu0 %v539
    %v541 = vpop.xlane.xlu0 %540
    %vm542 = vcmp.eq.f32.partialorder %v539, %v541
    %v543 = vsel %vm542, %v538, inf
    %544 = vmin.xlane.f32.xlu0 %v543
    %v545 = vpop.xlane.xlu0 %544
    %v546 = vcvt.f32.s32 %v545
    %v547 = vcvt.f32.s32 %v541
    %v548 = vshll.u32 %v547, 16
    %v549 = vadd.s32 %v548, %v546
    %vm550 = vcmp.eq.s32.totalorder %v100, %v549
    %v551 = vsel %vm550, 1, 0
    %v552 = vcvt.s32.f32 %v551
    %s553 = scalar_lea.vmem [#allocation13], 8
    %554 = vst [vmem:[%s553] sm:$0xff] %v552
    %s555 = scalar_lea.vmem [#allocation4], 16
    %v556 = vld [vmem:[%s555] sm:$0xff]
    %557 = vmatprep.subr.bf16.mxu0 0
    %558 = vmatpush1.bf16.msra.mxu0 %v250
    %559 = vmatprep.subr.bf16.mxu0 0
    %560 = vmatpush1.bf16.msra.mxu0 %v251
    %561 = vmatprep.subr.bf16.mxu0 0
    %562 = vmatpush1.bf16.msra.mxu0 0
    %563 = vmatprep.subr.bf16.mxu0 0
    %564 = vmatpush1.bf16.msra.mxu0 0
    %565 = vmatprep.subr.bf16.mxu0 0
    %566 = vmatpush1.bf16.msra.mxu0 0
    %567 = vmatprep.subr.bf16.mxu0 0
    %568 = vmatpush1.bf16.msra.mxu0 0
    %569 = vmatprep.subr.bf16.mxu0 0
    %570 = vmatpush1.bf16.msra.mxu0 0
    %571 = vmatprep.subr.bf16.mxu0 0
    %572 = vmatpush1.bf16.msra.mxu0 0
    %573 = vmatprep.subr.bf16.mxu0 0
    %574 = vmatpush1.bf16.msra.mxu0 0
    %575 = vmatprep.subr.bf16.mxu0 0
    %576 = vmatpush1.bf16.msra.mxu0 0
    %577 = vmatprep.subr.bf16.mxu0 0
    %578 = vmatpush1.bf16.msra.mxu0 0
    %579 = vmatprep.subr.bf16.mxu0 0
    %580 = vmatpush1.bf16.msra.mxu0 0
    %581 = vmatprep.subr.bf16.mxu0 0
    %582 = vmatpush1.bf16.msra.mxu0 0
    %583 = vmatprep.subr.bf16.mxu0 0
    %584 = vmatpush1.bf16.msra.mxu0 0
    %585 = vmatprep.subr.bf16.mxu0 0
    %586 = vmatpush1.bf16.msra.mxu0 0
    %587 = vmatprep.subr.bf16.mxu0 0
    %588 = vmatpush1.bf16.msra.mxu0 0
    %589 = vmatprep.mubr.bf16.mxu0 0
    %590 = vmatmul.mubr.bf16.gmra.mrb[0].mxu0 %v487
    %v591 = vpop.f32.mrb[0].mxu0
    %v592 = vadd.f32 0.0, %v591
    %v593 = vpop.f32.mrb[0].mxu0
    %v594 = vpop.f32.mrb[0].mxu0
    %v595 = vpop.f32.mrb[0].mxu0
    %596 = vdwg.mxu0
    %v597 = vadd.f32 %v556, %v592
    %v598 = vxor.u32 %v597, 2147483648
    %v599 = vmul.f32 %v598, 1.442695
    %v600 = vpow.pop %v599
    %v601 = vadd.f32 %v600, 1.0
    %v602 = vrcp.pop %v601
    %v603 = vmul.f32 1.0, %v602
    %v604 = vtanh.pop %v597
    %v605 = vmul.f32 %v603, %v475
    %607 = vrot.lane.b32.xlu0 %v604, 64
    %v608 = vpop.permute.xlu0 %607
    %v610 = vmul.f32 %v603, %v608
    %612 = vrot.lane.b32.xlu0 %v610, 32
    %v613 = vpop.permute.xlu0 %612
    %v615 = vadd.f32 %v605, %v613
    %v616 = vtanh.pop %v615
    %618 = vrot.lane.b32.xlu0 %v616, 64
    %v619 = vpop.permute.xlu0 %618
    %v621 = vmul.f32 %v603, %v619
    %v622 = vpack.c.bf16 %v621, %v621
    %624 = vrot.lane.b32.xlu0 %v622, 32
    %v625 = vpop.permute.xlu0 %624
    %v627 = vsel %vm152, %v625, 0
    %629 = vmatprep.subr.bf16.mxu0 0
    %630 = vmatpush1.bf16.msra.mxu0 %v344
    %631 = vmatprep.subr.bf16.mxu0 0
    %632 = vmatpush1.bf16.msra.mxu0 %v345
    %633 = vmatprep.subr.bf16.mxu0 0
    %634 = vmatpush1.bf16.msra.mxu0 0
    %635 = vmatprep.subr.bf16.mxu0 0
    %636 = vmatpush1.bf16.msra.mxu0 0
    %637 = vmatprep.subr.bf16.mxu0 0
    %638 = vmatpush1.bf16.msra.mxu0 0
    %639 = vmatprep.subr.bf16.mxu0 0
    %640 = vmatpush1.bf16.msra.mxu0 0
    %641 = vmatprep.subr.bf16.mxu0 0
    %642 = vmatpush1.bf16.msra.mxu0 0
    %643 = vmatprep.subr.bf16.mxu0 0
    %644 = vmatpush1.bf16.msra.mxu0 0
    %645 = vmatprep.subr.bf16.mxu0 0
    %646 = vmatpush1.bf16.msra.mxu0 0
    %647 = vmatprep.subr.bf16.mxu0 0
    %648 = vmatpush1.bf16.msra.mxu0 0
    %649 = vmatprep.subr.bf16.mxu0 0
    %650 = vmatpush1.bf16.msra.mxu0 0
    %651 = vmatprep.subr.bf16.mxu0 0
    %652 = vmatpush1.bf16.msra.mxu0 0
    %653 = vmatprep.subr.bf16.mxu0 0
    %654 = vmatpush1.bf16.msra.mxu0 0
    %655 = vmatprep.subr.bf16.mxu0 0
    %656 = vmatpush1.bf16.msra.mxu0 0
    %657 = vmatprep.subr.bf16.mxu0 0
    %658 = vmatpush1.bf16.msra.mxu0 0
    %659 = vmatprep.subr.bf16.mxu0 0
    %660 = vmatpush1.bf16.msra.mxu0 0
    %661 = vmatprep.mubr.bf16.mxu0 0
    %662 = vmatmul.mubr.bf16.gmra.mrb[0].mxu0 %v627
    %v663 = vpop.f32.mrb[0].mxu0
    %v664 = vadd.f32 %v331, %v663
    %v665 = vpop.f32.mrb[0].mxu0
    %v666 = vpop.f32.mrb[0].mxu0
    %v667 = vpop.f32.mrb[0].mxu0
    %668 = vdwg.mxu0
    %s669 = scalar_lea.vmem [#allocation8], 16
    %v670 = vld [vmem:[%s669] sm:$0xff]
    %v671 = vadd.f32 %v664, %v670
    %672 = vmax.xlane.f32.xlu0 %v671
    %v673 = vpop.xlane.xlu0 %672
    %vm674 = vcmp.ge.f32.partialorder %v671, %v673
    %v675 = vsel %vm674, %v100, 128
    %v676 = vand.u32 %v675, 65535
    %v677 = vshra.s32 %v675, 16
    %v678 = vcvt.s32.f32 %v676
    %v679 = vcvt.s32.f32 %v677
    %680 = vmin.xlane.f32.xlu0 %v679
    %v681 = vpop.xlane.xlu0 %680
    %vm682 = vcmp.eq.f32.partialorder %v679, %v681
    %v683 = vsel %vm682, %v678, inf
    %684 = vmin.xlane.f32.xlu0 %v683
    %v685 = vpop.xlane.xlu0 %684
    %v686 = vcvt.f32.s32 %v685
    %v687 = vcvt.f32.s32 %v681
    %v688 = vshll.u32 %v687, 16
    %v689 = vadd.s32 %v688, %v686
    %vm690 = vcmp.eq.s32.totalorder %v100, %v689
    %v691 = vsel %vm690, 1, 0
    %v692 = vcvt.s32.f32 %v691
    %s693 = scalar_lea.vmem [#allocation13], 16
    %694 = vst [vmem:[%s693] sm:$0xff] %v692
    %s695 = scalar_lea.vmem [#allocation4], 24
    %v696 = vld [vmem:[%s695] sm:$0xff]
    %697 = vmatprep.subr.bf16.mxu0 0
    %698 = vmatpush1.bf16.msra.mxu0 %v250
    %699 = vmatprep.subr.bf16.mxu0 0
    %700 = vmatpush1.bf16.msra.mxu0 %v251
    %701 = vmatprep.subr.bf16.mxu0 0
    %702 = vmatpush1.bf16.msra.mxu0 0
    %703 = vmatprep.subr.bf16.mxu0 0
    %704 = vmatpush1.bf16.msra.mxu0 0
    %705 = vmatprep.subr.bf16.mxu0 0
    %706 = vmatpush1.bf16.msra.mxu0 0
    %707 = vmatprep.subr.bf16.mxu0 0
    %708 = vmatpush1.bf16.msra.mxu0 0
    %709 = vmatprep.subr.bf16.mxu0 0
    %710 = vmatpush1.bf16.msra.mxu0 0
    %711 = vmatprep.subr.bf16.mxu0 0
    %712 = vmatpush1.bf16.msra.mxu0 0
    %713 = vmatprep.subr.bf16.mxu0 0
    %714 = vmatpush1.bf16.msra.mxu0 0
    %715 = vmatprep.subr.bf16.mxu0 0
    %716 = vmatpush1.bf16.msra.mxu0 0
    %717 = vmatprep.subr.bf16.mxu0 0
    %718 = vmatpush1.bf16.msra.mxu0 0
    %719 = vmatprep.subr.bf16.mxu0 0
    %720 = vmatpush1.bf16.msra.mxu0 0
    %721 = vmatprep.subr.bf16.mxu0 0
    %722 = vmatpush1.bf16.msra.mxu0 0
    %723 = vmatprep.subr.bf16.mxu0 0
    %724 = vmatpush1.bf16.msra.mxu0 0
    %725 = vmatprep.subr.bf16.mxu0 0
    %726 = vmatpush1.bf16.msra.mxu0 0
    %727 = vmatprep.subr.bf16.mxu0 0
    %728 = vmatpush1.bf16.msra.mxu0 0
    %729 = vmatprep.mubr.bf16.mxu0 0
    %730 = vmatmul.mubr.bf16.gmra.mrb[0].mxu0 %v627
    %v731 = vpop.f32.mrb[0].mxu0
    %v732 = vadd.f32 0.0, %v731
    %v733 = vpop.f32.mrb[0].mxu0
    %v734 = vpop.f32.mrb[0].mxu0
    %v735 = vpop.f32.mrb[0].mxu0
    %736 = vdwg.mxu0
    %v737 = vadd.f32 %v696, %v732
    %v738 = vxor.u32 %v737, 2147483648
    %v739 = vmul.f32 %v738, 1.442695
    %v740 = vpow.pop %v739
    %v741 = vadd.f32 %v740, 1.0
    %v742 = vrcp.pop %v741
    %v743 = vmul.f32 1.0, %v742
    %v744 = vtanh.pop %v737
    %v745 = vmul.f32 %v743, %v615
    %747 = vrot.lane.b32.xlu0 %v744, 64
    %v748 = vpop.permute.xlu0 %747
    %v750 = vmul.f32 %v743, %v748
    %752 = vrot.lane.b32.xlu0 %v750, 32
    %v753 = vpop.permute.xlu0 %752
    %v755 = vadd.f32 %v745, %v753
    %v756 = vtanh.pop %v755
    %758 = vrot.lane.b32.xlu0 %v756, 64
    %v759 = vpop.permute.xlu0 %758
    %v761 = vmul.f32 %v743, %v759
    %v762 = vpack.c.bf16 %v761, %v761
    %764 = vrot.lane.b32.xlu0 %v762, 32
    %v765 = vpop.permute.xlu0 %764
    %v767 = vsel %vm152, %v765, 0
    %769 = vmatprep.subr.bf16.mxu0 0
    %770 = vmatpush1.bf16.msra.mxu0 %v344
    %771 = vmatprep.subr.bf16.mxu0 0
    %772 = vmatpush1.bf16.msra.mxu0 %v345
    %773 = vmatprep.subr.bf16.mxu0 0
    %774 = vmatpush1.bf16.msra.mxu0 0
    %775 = vmatprep.subr.bf16.mxu0 0
    %776 = vmatpush1.bf16.msra.mxu0 0
    %777 = vmatprep.subr.bf16.mxu0 0
    %778 = vmatpush1.bf16.msra.mxu0 0
    %779 = vmatprep.subr.bf16.mxu0 0
    %780 = vmatpush1.bf16.msra.mxu0 0
    %781 = vmatprep.subr.bf16.mxu0 0
    %782 = vmatpush1.bf16.msra.mxu0 0
    %783 = vmatprep.subr.bf16.mxu0 0
    %784 = vmatpush1.bf16.msra.mxu0 0
    %785 = vmatprep.subr.bf16.mxu0 0
    %786 = vmatpush1.bf16.msra.mxu0 0
    %787 = vmatprep.subr.bf16.mxu0 0
    %788 = vmatpush1.bf16.msra.mxu0 0
    %789 = vmatprep.subr.bf16.mxu0 0
    %790 = vmatpush1.bf16.msra.mxu0 0
    %791 = vmatprep.subr.bf16.mxu0 0
    %792 = vmatpush1.bf16.msra.mxu0 0
    %793 = vmatprep.subr.bf16.mxu0 0
    %794 = vmatpush1.bf16.msra.mxu0 0
    %795 = vmatprep.subr.bf16.mxu0 0
    %796 = vmatpush1.bf16.msra.mxu0 0
    %797 = vmatprep.subr.bf16.mxu0 0
    %798 = vmatpush1.bf16.msra.mxu0 0
    %799 = vmatprep.subr.bf16.mxu0 0
    %800 = vmatpush1.bf16.msra.mxu0 0
    %801 = vmatprep.mubr.bf16.mxu0 0
    %802 = vmatmul.mubr.bf16.gmra.mrb[0].mxu0 %v767
    %v803 = vpop.f32.mrb[0].mxu0
    %v804 = vadd.f32 %v331, %v803
    %v805 = vpop.f32.mrb[0].mxu0
    %v806 = vpop.f32.mrb[0].mxu0
    %v807 = vpop.f32.mrb[0].mxu0
    %808 = vdwg.mxu0
    %s809 = scalar_lea.vmem [#allocation8], 24
    %v810 = vld [vmem:[%s809] sm:$0xff]
    %v811 = vadd.f32 %v804, %v810
    %812 = vmax.xlane.f32.xlu0 %v811
    %v813 = vpop.xlane.xlu0 %812
    %vm814 = vcmp.ge.f32.partialorder %v811, %v813
    %v815 = vsel %vm814, %v100, 128
    %v816 = vand.u32 %v815, 65535
    %v817 = vshra.s32 %v815, 16
    %v818 = vcvt.s32.f32 %v816
    %v819 = vcvt.s32.f32 %v817
    %820 = vmin.xlane.f32.xlu0 %v819
    %v821 = vpop.xlane.xlu0 %820
    %vm822 = vcmp.eq.f32.partialorder %v819, %v821
    %v823 = vsel %vm822, %v818, inf
    %824 = vmin.xlane.f32.xlu0 %v823
    %v825 = vpop.xlane.xlu0 %824
    %v826 = vcvt.f32.s32 %v825
    %v827 = vcvt.f32.s32 %v821
    %v828 = vshll.u32 %v827, 16
    %v829 = vadd.s32 %v828, %v826
    %vm830 = vcmp.eq.s32.totalorder %v100, %v829
    %v831 = vsel %vm830, 1, 0
    %v832 = vcvt.s32.f32 %v831
    %s833 = scalar_lea.vmem [#allocation13], 24
    %834 = vst [vmem:[%s833] sm:$0xff] %v832
    %s835 = scalar_lea.vmem [#allocation4], 32
    %v836 = vld [vmem:[%s835] sm:$0xff]
    %837 = vmatprep.subr.bf16.mxu0 0
    %838 = vmatpush1.bf16.msra.mxu0 %v250
    %839 = vmatprep.subr.bf16.mxu0 0
    %840 = vmatpush1.bf16.msra.mxu0 %v251
    %841 = vmatprep.subr.bf16.mxu0 0
    %842 = vmatpush1.bf16.msra.mxu0 0
    %843 = vmatprep.subr.bf16.mxu0 0
    %844 = vmatpush1.bf16.msra.mxu0 0
    %845 = vmatprep.subr.bf16.mxu0 0
    %846 = vmatpush1.bf16.msra.mxu0 0
    %847 = vmatprep.subr.bf16.mxu0 0
    %848 = vmatpush1.bf16.msra.mxu0 0
    %849 = vmatprep.subr.bf16.mxu0 0
    %850 = vmatpush1.bf16.msra.mxu0 0
    %851 = vmatprep.subr.bf16.mxu0 0
    %852 = vmatpush1.bf16.msra.mxu0 0
    %853 = vmatprep.subr.bf16.mxu0 0
    %854 = vmatpush1.bf16.msra.mxu0 0
    %855 = vmatprep.subr.bf16.mxu0 0
    %856 = vmatpush1.bf16.msra.mxu0 0
    %857 = vmatprep.subr.bf16.mxu0 0
    %858 = vmatpush1.bf16.msra.mxu0 0
    %859 = vmatprep.subr.bf16.mxu0 0
    %860 = vmatpush1.bf16.msra.mxu0 0
    %861 = vmatprep.subr.bf16.mxu0 0
    %862 = vmatpush1.bf16.msra.mxu0 0
    %863 = vmatprep.subr.bf16.mxu0 0
    %864 = vmatpush1.bf16.msra.mxu0 0
    %865 = vmatprep.subr.bf16.mxu0 0
    %866 = vmatpush1.bf16.msra.mxu0 0
    %867 = vmatprep.subr.bf16.mxu0 0
    %868 = vmatpush1.bf16.msra.mxu0 0
    %869 = vmatprep.mubr.bf16.mxu0 0
    %870 = vmatmul.mubr.bf16.gmra.mrb[0].mxu0 %v767
    %v871 = vpop.f32.mrb[0].mxu0
    %v872 = vadd.f32 0.0, %v871
    %v873 = vpop.f32.mrb[0].mxu0
    %v874 = vpop.f32.mrb[0].mxu0
    %v875 = vpop.f32.mrb[0].mxu0
    %876 = vdwg.mxu0
    %v877 = vadd.f32 %v836, %v872
    %v878 = vxor.u32 %v877, 2147483648
    %v879 = vmul.f32 %v878, 1.442695
    %v880 = vpow.pop %v879
    %v881 = vadd.f32 %v880, 1.0
    %v882 = vrcp.pop %v881
    %v883 = vmul.f32 1.0, %v882
    %v884 = vtanh.pop %v877
    %v885 = vmul.f32 %v883, %v755
    %887 = vrot.lane.b32.xlu0 %v884, 64
    %v888 = vpop.permute.xlu0 %887
    %v890 = vmul.f32 %v883, %v888
    %892 = vrot.lane.b32.xlu0 %v890, 32
    %v893 = vpop.permute.xlu0 %892
    %v895 = vadd.f32 %v885, %v893
    %v896 = vtanh.pop %v895
    %898 = vrot.lane.b32.xlu0 %v896, 64
    %v899 = vpop.permute.xlu0 %898
    %v901 = vmul.f32 %v883, %v899
    %v902 = vpack.c.bf16 %v901, %v901
    %904 = vrot.lane.b32.xlu0 %v902, 32
    %v905 = vpop.permute.xlu0 %904
    %v907 = vsel %vm152, %v905, 0
    %909 = vmatprep.subr.bf16.mxu0 0
    %910 = vmatpush1.bf16.msra.mxu0 %v344
    %911 = vmatprep.subr.bf16.mxu0 0
    %912 = vmatpush1.bf16.msra.mxu0 %v345
    %913 = vmatprep.subr.bf16.mxu0 0
    %914 = vmatpush1.bf16.msra.mxu0 0
    %915 = vmatprep.subr.bf16.mxu0 0
    %916 = vmatpush1.bf16.msra.mxu0 0
    %917 = vmatprep.subr.bf16.mxu0 0
    %918 = vmatpush1.bf16.msra.mxu0 0
    %919 = vmatprep.subr.bf16.mxu0 0
    %920 = vmatpush1.bf16.msra.mxu0 0
    %921 = vmatprep.subr.bf16.mxu0 0
    %922 = vmatpush1.bf16.msra.mxu0 0
    %923 = vmatprep.subr.bf16.mxu0 0
    %924 = vmatpush1.bf16.msra.mxu0 0
    %925 = vmatprep.subr.bf16.mxu0 0
    %926 = vmatpush1.bf16.msra.mxu0 0
    %927 = vmatprep.subr.bf16.mxu0 0
    %928 = vmatpush1.bf16.msra.mxu0 0
    %929 = vmatprep.subr.bf16.mxu0 0
    %930 = vmatpush1.bf16.msra.mxu0 0
    %931 = vmatprep.subr.bf16.mxu0 0
    %932 = vmatpush1.bf16.msra.mxu0 0
    %933 = vmatprep.subr.bf16.mxu0 0
    %934 = vmatpush1.bf16.msra.mxu0 0
    %935 = vmatprep.subr.bf16.mxu0 0
    %936 = vmatpush1.bf16.msra.mxu0 0
    %937 = vmatprep.subr.bf16.mxu0 0
    %938 = vmatpush1.bf16.msra.mxu0 0
    %939 = vmatprep.subr.bf16.mxu0 0
    %940 = vmatpush1.bf16.msra.mxu0 0
    %941 = vmatprep.mubr.bf16.mxu0 0
    %942 = vmatmul.mubr.bf16.gmra.mrb[0].mxu0 %v907
    %v943 = vpop.f32.mrb[0].mxu0
    %v944 = vadd.f32 %v331, %v943
    %v945 = vpop.f32.mrb[0].mxu0
    %v946 = vpop.f32.mrb[0].mxu0
    %v947 = vpop.f32.mrb[0].mxu0
    %948 = vdwg.mxu0
    %s949 = scalar_lea.vmem [#allocation8], 32
    %v950 = vld [vmem:[%s949] sm:$0xff]
    %v951 = vadd.f32 %v944, %v950
    %952 = vmax.xlane.f32.xlu0 %v951
    %v953 = vpop.xlane.xlu0 %952
    %vm954 = vcmp.ge.f32.partialorder %v951, %v953
    %v955 = vsel %vm954, %v100, 128
    %v956 = vand.u32 %v955, 65535
    %v957 = vshra.s32 %v955, 16
    %v958 = vcvt.s32.f32 %v956
    %v959 = vcvt.s32.f32 %v957
    %960 = vmin.xlane.f32.xlu0 %v959
    %v961 = vpop.xlane.xlu0 %960
    %vm962 = vcmp.eq.f32.partialorder %v959, %v961
    %v963 = vsel %vm962, %v958, inf
    %964 = vmin.xlane.f32.xlu0 %v963
    %v965 = vpop.xlane.xlu0 %964
    %v966 = vcvt.f32.s32 %v965
    %v967 = vcvt.f32.s32 %v961
    %v968 = vshll.u32 %v967, 16
    %v969 = vadd.s32 %v968, %v966
    %vm970 = vcmp.eq.s32.totalorder %v100, %v969
    %v971 = vsel %vm970, 1, 0
    %v972 = vcvt.s32.f32 %v971
    %s973 = scalar_lea.vmem [#allocation13], 32
    %974 = vst [vmem:[%s973] sm:$0xff] %v972
    %s975 = scalar_lea.vmem [#allocation4], 40
    %v976 = vld [vmem:[%s975] sm:$0xff]
    %977 = vmatprep.subr.bf16.mxu0 0
    %978 = vmatpush1.bf16.msra.mxu0 %v250
    %979 = vmatprep.subr.bf16.mxu0 0
    %980 = vmatpush1.bf16.msra.mxu0 %v251
    %981 = vmatprep.subr.bf16.mxu0 0
    %982 = vmatpush1.bf16.msra.mxu0 0
    %983 = vmatprep.subr.bf16.mxu0 0
    %984 = vmatpush1.bf16.msra.mxu0 0
    %985 = vmatprep.subr.bf16.mxu0 0
    %986 = vmatpush1.bf16.msra.mxu0 0
    %987 = vmatprep.subr.bf16.mxu0 0
    %988 = vmatpush1.bf16.msra.mxu0 0
    %989 = vmatprep.subr.bf16.mxu0 0
    %990 = vmatpush1.bf16.msra.mxu0 0
    %991 = vmatprep.subr.bf16.mxu0 0
    %992 = vmatpush1.bf16.msra.mxu0 0
    %993 = vmatprep.subr.bf16.mxu0 0
    %994 = vmatpush1.bf16.msra.mxu0 0
    %995 = vmatprep.subr.bf16.mxu0 0
    %996 = vmatpush1.bf16.msra.mxu0 0
    %997 = vmatprep.subr.bf16.mxu0 0
    %998 = vmatpush1.bf16.msra.mxu0 0
    %999 = vmatprep.subr.bf16.mxu0 0
    %1000 = vmatpush1.bf16.msra.mxu0 0
    %1001 = vmatprep.subr.bf16.mxu0 0
    %1002 = vmatpush1.bf16.msra.mxu0 0
    %1003 = vmatprep.subr.bf16.mxu0 0
    %1004 = vmatpush1.bf16.msra.mxu0 0
    %1005 = vmatprep.subr.bf16.mxu0 0
    %1006 = vmatpush1.bf16.msra.mxu0 0
    %1007 = vmatprep.subr.bf16.mxu0 0
    %1008 = vmatpush1.bf16.msra.mxu0 0
    %1009 = vmatprep.mubr.bf16.mxu0 0
    %1010 = vmatmul.mubr.bf16.gmra.mrb[0].mxu0 %v907
    %v1011 = vpop.f32.mrb[0].mxu0
    %v1012 = vadd.f32 0.0, %v1011
    %v1013 = vpop.f32.mrb[0].mxu0
    %v1014 = vpop.f32.mrb[0].mxu0
    %v1015 = vpop.f32.mrb[0].mxu0
    %1016 = vdwg.mxu0
    %v1017 = vadd.f32 %v976, %v1012
    %v1018 = vxor.u32 %v1017, 2147483648
    %v1019 = vmul.f32 %v1018, 1.442695
    %v1020 = vpow.pop %v1019
    %v1021 = vadd.f32 %v1020, 1.0
    %v1022 = vrcp.pop %v1021
    %v1023 = vmul.f32 1.0, %v1022
    %v1024 = vtanh.pop %v1017
    %v1025 = vmul.f32 %v1023, %v895
    %1027 = vrot.lane.b32.xlu0 %v1024, 64
    %v1028 = vpop.permute.xlu0 %1027
    %v1030 = vmul.f32 %v1023, %v1028
    %1032 = vrot.lane.b32.xlu0 %v1030, 32
    %v1033 = vpop.permute.xlu0 %1032
    %v1035 = vadd.f32 %v1025, %v1033
    %v1036 = vtanh.pop %v1035
    %1038 = vrot.lane.b32.xlu0 %v1036, 64
    %v1039 = vpop.permute.xlu0 %1038
    %v1041 = vmul.f32 %v1023, %v1039
    %v1042 = vpack.c.bf16 %v1041, %v1041
    %1044 = vrot.lane.b32.xlu0 %v1042, 32
    %v1045 = vpop.permute.xlu0 %1044
    %v1047 = vsel %vm152, %v1045, 0
    %1049 = vmatprep.subr.bf16.mxu0 0
    %1050 = vmatpush1.bf16.msra.mxu0 %v344
    %1051 = vmatprep.subr.bf16.mxu0 0
    %1052 = vmatpush1.bf16.msra.mxu0 %v345
    %1053 = vmatprep.subr.bf16.mxu0 0
    %1054 = vmatpush1.bf16.msra.mxu0 0
    %1055 = vmatprep.subr.bf16.mxu0 0
    %1056 = vmatpush1.bf16.msra.mxu0 0
    %1057 = vmatprep.subr.bf16.mxu0 0
    %1058 = vmatpush1.bf16.msra.mxu0 0
    %1059 = vmatprep.subr.bf16.mxu0 0
    %1060 = vmatpush1.bf16.msra.mxu0 0
    %1061 = vmatprep.subr.bf16.mxu0 0
    %1062 = vmatpush1.bf16.msra.mxu0 0
    %1063 = vmatprep.subr.bf16.mxu0 0
    %1064 = vmatpush1.bf16.msra.mxu0 0
    %1065 = vmatprep.subr.bf16.mxu0 0
    %1066 = vmatpush1.bf16.msra.mxu0 0
    %1067 = vmatprep.subr.bf16.mxu0 0
    %1068 = vmatpush1.bf16.msra.mxu0 0
    %1069 = vmatprep.subr.bf16.mxu0 0
    %1070 = vmatpush1.bf16.msra.mxu0 0
    %1071 = vmatprep.subr.bf16.mxu0 0
    %1072 = vmatpush1.bf16.msra.mxu0 0
    %1073 = vmatprep.subr.bf16.mxu0 0
    %1074 = vmatpush1.bf16.msra.mxu0 0
    %1075 = vmatprep.subr.bf16.mxu0 0
    %1076 = vmatpush1.bf16.msra.mxu0 0
    %1077 = vmatprep.subr.bf16.mxu0 0
    %1078 = vmatpush1.bf16.msra.mxu0 0
    %1079 = vmatprep.subr.bf16.mxu0 0
    %1080 = vmatpush1.bf16.msra.mxu0 0
    %1081 = vmatprep.mubr.bf16.mxu0 0
    %1082 = vmatmul.mubr.bf16.gmra.mrb[0].mxu0 %v1047
    %v1083 = vpop.f32.mrb[0].mxu0
    %v1084 = vadd.f32 %v331, %v1083
    %v1085 = vpop.f32.mrb[0].mxu0
    %v1086 = vpop.f32.mrb[0].mxu0
    %v1087 = vpop.f32.mrb[0].mxu0
    %1088 = vdwg.mxu0
    %s1089 = scalar_lea.vmem [#allocation8], 40
    %v1090 = vld [vmem:[%s1089] sm:$0xff]
    %v1091 = vadd.f32 %v1084, %v1090
    %1092 = vmax.xlane.f32.xlu0 %v1091
    %v1093 = vpop.xlane.xlu0 %1092
    %vm1094 = vcmp.ge.f32.partialorder %v1091, %v1093
    %v1095 = vsel %vm1094, %v100, 128
    %v1096 = vand.u32 %v1095, 65535
    %v1097 = vshra.s32 %v1095, 16
    %v1098 = vcvt.s32.f32 %v1096
    %v1099 = vcvt.s32.f32 %v1097
    %1100 = vmin.xlane.f32.xlu0 %v1099
    %v1101 = vpop.xlane.xlu0 %1100
    %vm1102 = vcmp.eq.f32.partialorder %v1099, %v1101
    %v1103 = vsel %vm1102, %v1098, inf
    %1104 = vmin.xlane.f32.xlu0 %v1103
    %v1105 = vpop.xlane.xlu0 %1104
    %v1106 = vcvt.f32.s32 %v1105
    %v1107 = vcvt.f32.s32 %v1101
    %v1108 = vshll.u32 %v1107, 16
    %v1109 = vadd.s32 %v1108, %v1106
    %vm1110 = vcmp.eq.s32.totalorder %v100, %v1109
    %v1111 = vsel %vm1110, 1, 0
    %v1112 = vcvt.s32.f32 %v1111
    %s1113 = scalar_lea.vmem [#allocation13], 40
    %1114 = vst [vmem:[%s1113] sm:$0xff] %v1112
    %s1115 = scalar_lea.vmem [#allocation4], 48
    %v1116 = vld [vmem:[%s1115] sm:$0xff]
    %1117 = vmatprep.subr.bf16.mxu0 0
    %1118 = vmatpush1.bf16.msra.mxu0 %v250
    %1119 = vmatprep.subr.bf16.mxu0 0
    %1120 = vmatpush1.bf16.msra.mxu0 %v251
    %1121 = vmatprep.subr.bf16.mxu0 0
    %1122 = vmatpush1.bf16.msra.mxu0 0
    %1123 = vmatprep.subr.bf16.mxu0 0
    %1124 = vmatpush1.bf16.msra.mxu0 0
    %1125 = vmatprep.subr.bf16.mxu0 0
    %1126 = vmatpush1.bf16.msra.mxu0 0
    %1127 = vmatprep.subr.bf16.mxu0 0
    %1128 = vmatpush1.bf16.msra.mxu0 0
    %1129 = vmatprep.subr.bf16.mxu0 0
    %1130 = vmatpush1.bf16.msra.mxu0 0
    %1131 = vmatprep.subr.bf16.mxu0 0
    %1132 = vmatpush1.bf16.msra.mxu0 0
    %1133 = vmatprep.subr.bf16.mxu0 0
    %1134 = vmatpush1.bf16.msra.mxu0 0
    %1135 = vmatprep.subr.bf16.mxu0 0
    %1136 = vmatpush1.bf16.msra.mxu0 0
    %1137 = vmatprep.subr.bf16.mxu0 0
    %1138 = vmatpush1.bf16.msra.mxu0 0
    %1139 = vmatprep.subr.bf16.mxu0 0
    %1140 = vmatpush1.bf16.msra.mxu0 0
    %1141 = vmatprep.subr.bf16.mxu0 0
    %1142 = vmatpush1.bf16.msra.mxu0 0
    %1143 = vmatprep.subr.bf16.mxu0 0
    %1144 = vmatpush1.bf16.msra.mxu0 0
    %1145 = vmatprep.subr.bf16.mxu0 0
    %1146 = vmatpush1.bf16.msra.mxu0 0
    %1147 = vmatprep.subr.bf16.mxu0 0
    %1148 = vmatpush1.bf16.msra.mxu0 0
    %1149 = vmatprep.mubr.bf16.mxu0 0
    %1150 = vmatmul.mubr.bf16.gmra.mrb[0].mxu0 %v1047
    %v1151 = vpop.f32.mrb[0].mxu0
    %v1152 = vadd.f32 0.0, %v1151
    %v1153 = vpop.f32.mrb[0].mxu0
    %v1154 = vpop.f32.mrb[0].mxu0
    %v1155 = vpop.f32.mrb[0].mxu0
    %1156 = vdwg.mxu0
    %v1157 = vadd.f32 %v1116, %v1152
    %v1158 = vxor.u32 %v1157, 2147483648
    %v1159 = vmul.f32 %v1158, 1.442695
    %v1160 = vpow.pop %v1159
    %v1161 = vadd.f32 %v1160, 1.0
    %v1162 = vrcp.pop %v1161
    %v1163 = vmul.f32 1.0, %v1162
    %v1164 = vtanh.pop %v1157
    %v1165 = vmul.f32 %v1163, %v1035
    %1167 = vrot.lane.b32.xlu0 %v1164, 64
    %v1168 = vpop.permute.xlu0 %1167
    %v1170 = vmul.f32 %v1163, %v1168
    %1172 = vrot.lane.b32.xlu0 %v1170, 32
    %v1173 = vpop.permute.xlu0 %1172
    %v1175 = vadd.f32 %v1165, %v1173
    %v1176 = vtanh.pop %v1175
    %1178 = vrot.lane.b32.xlu0 %v1176, 64
    %v1179 = vpop.permute.xlu0 %1178
    %v1181 = vmul.f32 %v1163, %v1179
    %v1182 = vpack.c.bf16 %v1181, %v1181
    %1184 = vrot.lane.b32.xlu0 %v1182, 32
    %v1185 = vpop.permute.xlu0 %1184
    %v1187 = vsel %vm152, %v1185, 0
    %1189 = vmatprep.subr.bf16.mxu0 0
    %1190 = vmatpush1.bf16.msra.mxu0 %v344
    %1191 = vmatprep.subr.bf16.mxu0 0
    %1192 = vmatpush1.bf16.msra.mxu0 %v345
    %1193 = vmatprep.subr.bf16.mxu0 0
    %1194 = vmatpush1.bf16.msra.mxu0 0
    %1195 = vmatprep.subr.bf16.mxu0 0
    %1196 = vmatpush1.bf16.msra.mxu0 0
    %1197 = vmatprep.subr.bf16.mxu0 0
    %1198 = vmatpush1.bf16.msra.mxu0 0
    %1199 = vmatprep.subr.bf16.mxu0 0
    %1200 = vmatpush1.bf16.msra.mxu0 0
    %1201 = vmatprep.subr.bf16.mxu0 0
    %1202 = vmatpush1.bf16.msra.mxu0 0
    %1203 = vmatprep.subr.bf16.mxu0 0
    %1204 = vmatpush1.bf16.msra.mxu0 0
    %1205 = vmatprep.subr.bf16.mxu0 0
    %1206 = vmatpush1.bf16.msra.mxu0 0
    %1207 = vmatprep.subr.bf16.mxu0 0
    %1208 = vmatpush1.bf16.msra.mxu0 0
    %1209 = vmatprep.subr.bf16.mxu0 0
    %1210 = vmatpush1.bf16.msra.mxu0 0
    %1211 = vmatprep.subr.bf16.mxu0 0
    %1212 = vmatpush1.bf16.msra.mxu0 0
    %1213 = vmatprep.subr.bf16.mxu0 0
    %1214 = vmatpush1.bf16.msra.mxu0 0
    %1215 = vmatprep.subr.bf16.mxu0 0
    %1216 = vmatpush1.bf16.msra.mxu0 0
    %1217 = vmatprep.subr.bf16.mxu0 0
    %1218 = vmatpush1.bf16.msra.mxu0 0
    %1219 = vmatprep.subr.bf16.mxu0 0
    %1220 = vmatpush1.bf16.msra.mxu0 0
    %1221 = vmatprep.mubr.bf16.mxu0 0
    %1222 = vmatmul.mubr.bf16.gmra.mrb[0].mxu0 %v1187
    %v1223 = vpop.f32.mrb[0].mxu0
    %v1224 = vadd.f32 %v331, %v1223
    %v1225 = vpop.f32.mrb[0].mxu0
    %v1226 = vpop.f32.mrb[0].mxu0
    %v1227 = vpop.f32.mrb[0].mxu0
    %1228 = vdwg.mxu0
    %s1229 = scalar_lea.vmem [#allocation8], 48
    %v1230 = vld [vmem:[%s1229] sm:$0xff]
    %v1231 = vadd.f32 %v1224, %v1230
    %1232 = vmax.xlane.f32.xlu0 %v1231
    %v1233 = vpop.xlane.xlu0 %1232
    %vm1234 = vcmp.ge.f32.partialorder %v1231, %v1233
    %v1235 = vsel %vm1234, %v100, 128
    %v1236 = vand.u32 %v1235, 65535
    %v1237 = vshra.s32 %v1235, 16
    %v1238 = vcvt.s32.f32 %v1236
    %v1239 = vcvt.s32.f32 %v1237
    %1240 = vmin.xlane.f32.xlu0 %v1239
    %v1241 = vpop.xlane.xlu0 %1240
    %vm1242 = vcmp.eq.f32.partialorder %v1239, %v1241
    %v1243 = vsel %vm1242, %v1238, inf
    %1244 = vmin.xlane.f32.xlu0 %v1243
    %v1245 = vpop.xlane.xlu0 %1244
    %v1246 = vcvt.f32.s32 %v1245
    %v1247 = vcvt.f32.s32 %v1241
    %v1248 = vshll.u32 %v1247, 16
    %v1249 = vadd.s32 %v1248, %v1246
    %vm1250 = vcmp.eq.s32.totalorder %v100, %v1249
    %v1251 = vsel %vm1250, 1, 0
    %v1252 = vcvt.s32.f32 %v1251
    %s1253 = scalar_lea.vmem [#allocation13], 48
    %1254 = vst [vmem:[%s1253] sm:$0xff] %v1252
    %s1255 = scalar_lea.vmem [#allocation4], 56
    %v1256 = vld [vmem:[%s1255] sm:$0xff]
    %1257 = vmatprep.subr.bf16.mxu0 0
    %1258 = vmatpush1.bf16.msra.mxu0 %v250
    %1259 = vmatprep.subr.bf16.mxu0 0
    %1260 = vmatpush1.bf16.msra.mxu0 %v251
    %1261 = vmatprep.subr.bf16.mxu0 0
    %1262 = vmatpush1.bf16.msra.mxu0 0
    %1263 = vmatprep.subr.bf16.mxu0 0
    %1264 = vmatpush1.bf16.msra.mxu0 0
    %1265 = vmatprep.subr.bf16.mxu0 0
    %1266 = vmatpush1.bf16.msra.mxu0 0
    %1267 = vmatprep.subr.bf16.mxu0 0
    %1268 = vmatpush1.bf16.msra.mxu0 0
    %1269 = vmatprep.subr.bf16.mxu0 0
    %1270 = vmatpush1.bf16.msra.mxu0 0
    %1271 = vmatprep.subr.bf16.mxu0 0
    %1272 = vmatpush1.bf16.msra.mxu0 0
    %1273 = vmatprep.subr.bf16.mxu0 0
    %1274 = vmatpush1.bf16.msra.mxu0 0
    %1275 = vmatprep.subr.bf16.mxu0 0
    %1276 = vmatpush1.bf16.msra.mxu0 0
    %1277 = vmatprep.subr.bf16.mxu0 0
    %1278 = vmatpush1.bf16.msra.mxu0 0
    %1279 = vmatprep.subr.bf16.mxu0 0
    %1280 = vmatpush1.bf16.msra.mxu0 0
    %1281 = vmatprep.subr.bf16.mxu0 0
    %1282 = vmatpush1.bf16.msra.mxu0 0
    %1283 = vmatprep.subr.bf16.mxu0 0
    %1284 = vmatpush1.bf16.msra.mxu0 0
    %1285 = vmatprep.subr.bf16.mxu0 0
    %1286 = vmatpush1.bf16.msra.mxu0 0
    %1287 = vmatprep.subr.bf16.mxu0 0
    %1288 = vmatpush1.bf16.msra.mxu0 0
    %1289 = vmatprep.mubr.bf16.mxu0 0
    %1290 = vmatmul.mubr.bf16.gmra.mrb[0].mxu0 %v1187
    %v1291 = vpop.f32.mrb[0].mxu0
    %v1292 = vadd.f32 0.0, %v1291
    %v1293 = vpop.f32.mrb[0].mxu0
    %v1294 = vpop.f32.mrb[0].mxu0
    %v1295 = vpop.f32.mrb[0].mxu0
    %1296 = vdwg.mxu0
    %v1297 = vadd.f32 %v1256, %v1292
    %v1298 = vxor.u32 %v1297, 2147483648
    %v1299 = vmul.f32 %v1298, 1.442695
    %v1300 = vpow.pop %v1299
    %v1301 = vadd.f32 %v1300, 1.0
    %v1302 = vrcp.pop %v1301
    %v1303 = vmul.f32 1.0, %v1302
    %v1304 = vtanh.pop %v1297
    %v1305 = vmul.f32 %v1303, %v1175
    %1307 = vrot.lane.b32.xlu0 %v1304, 64
    %v1308 = vpop.permute.xlu0 %1307
    %v1310 = vmul.f32 %v1303, %v1308
    %1312 = vrot.lane.b32.xlu0 %v1310, 32
    %v1313 = vpop.permute.xlu0 %1312
    %v1315 = vadd.f32 %v1305, %v1313
    %v1316 = vtanh.pop %v1315
    %1318 = vrot.lane.b32.xlu0 %v1316, 64
    %v1319 = vpop.permute.xlu0 %1318
    %v1321 = vmul.f32 %v1303, %v1319
    %v1322 = vpack.c.bf16 %v1321, %v1321
    %1324 = vrot.lane.b32.xlu0 %v1322, 32
    %v1325 = vpop.permute.xlu0 %1324
    %v1327 = vsel %vm152, %v1325, 0
    %1329 = vmatprep.subr.bf16.mxu0 0
    %1330 = vmatpush1.bf16.msra.mxu0 %v344
    %1331 = vmatprep.subr.bf16.mxu0 0
    %1332 = vmatpush1.bf16.msra.mxu0 %v345
    %1333 = vmatprep.subr.bf16.mxu0 0
    %1334 = vmatpush1.bf16.msra.mxu0 0
    %1335 = vmatprep.subr.bf16.mxu0 0
    %1336 = vmatpush1.bf16.msra.mxu0 0
    %1337 = vmatprep.subr.bf16.mxu0 0
    %1338 = vmatpush1.bf16.msra.mxu0 0
    %1339 = vmatprep.subr.bf16.mxu0 0
    %1340 = vmatpush1.bf16.msra.mxu0 0
    %1341 = vmatprep.subr.bf16.mxu0 0
    %1342 = vmatpush1.bf16.msra.mxu0 0
    %1343 = vmatprep.subr.bf16.mxu0 0
    %1344 = vmatpush1.bf16.msra.mxu0 0
    %1345 = vmatprep.subr.bf16.mxu0 0
    %1346 = vmatpush1.bf16.msra.mxu0 0
    %1347 = vmatprep.subr.bf16.mxu0 0
    %1348 = vmatpush1.bf16.msra.mxu0 0
    %1349 = vmatprep.subr.bf16.mxu0 0
    %1350 = vmatpush1.bf16.msra.mxu0 0
    %1351 = vmatprep.subr.bf16.mxu0 0
    %1352 = vmatpush1.bf16.msra.mxu0 0
    %1353 = vmatprep.subr.bf16.mxu0 0
    %1354 = vmatpush1.bf16.msra.mxu0 0
    %1355 = vmatprep.subr.bf16.mxu0 0
    %1356 = vmatpush1.bf16.msra.mxu0 0
    %1357 = vmatprep.subr.bf16.mxu0 0
    %1358 = vmatpush1.bf16.msra.mxu0 0
    %1359 = vmatprep.subr.bf16.mxu0 0
    %1360 = vmatpush1.bf16.msra.mxu0 0
    %1361 = vmatprep.mubr.bf16.mxu0 0
    %1362 = vmatmul.mubr.bf16.gmra.mrb[0].mxu0 %v1327
    %v1363 = vpop.f32.mrb[0].mxu0
    %v1364 = vadd.f32 %v331, %v1363
    %v1365 = vpop.f32.mrb[0].mxu0
    %v1366 = vpop.f32.mrb[0].mxu0
    %v1367 = vpop.f32.mrb[0].mxu0
    %1368 = vdwg.mxu0
    %s1369 = scalar_lea.vmem [#allocation8], 56
    %v1370 = vld [vmem:[%s1369] sm:$0xff]
    %v1371 = vadd.f32 %v1364, %v1370
    %1372 = vmax.xlane.f32.xlu0 %v1371
    %v1373 = vpop.xlane.xlu0 %1372
    %vm1374 = vcmp.ge.f32.partialorder %v1371, %v1373
    %v1375 = vsel %vm1374, %v100, 128
    %v1376 = vand.u32 %v1375, 65535
    %v1377 = vshra.s32 %v1375, 16
    %v1378 = vcvt.s32.f32 %v1376
    %v1379 = vcvt.s32.f32 %v1377
    %1380 = vmin.xlane.f32.xlu0 %v1379
    %v1381 = vpop.xlane.xlu0 %1380
    %vm1382 = vcmp.eq.f32.partialorder %v1379, %v1381
    %v1383 = vsel %vm1382, %v1378, inf
    %1384 = vmin.xlane.f32.xlu0 %v1383
    %v1385 = vpop.xlane.xlu0 %1384
    %v1386 = vcvt.f32.s32 %v1385
    %v1387 = vcvt.f32.s32 %v1381
    %v1388 = vshll.u32 %v1387, 16
    %v1389 = vadd.s32 %v1388, %v1386
    %vm1390 = vcmp.eq.s32.totalorder %v100, %v1389
    %v1391 = vsel %vm1390, 1, 0
    %v1392 = vcvt.s32.f32 %v1391
    %s1393 = scalar_lea.vmem [#allocation13], 56
    %1394 = vst [vmem:[%s1393] sm:$0xff] %v1392
    %1396 = vrot.lane.b32.xlu0 %v1321, 32
    %v1397 = vpop.permute.xlu0 %1396
    %1399 = vst.msk [vmem:[#allocation2] sm:$0xff] %vm152, %v1397
    %1401 = vrot.lane.b32.xlu0 %v1315, 96
    %v1402 = vpop.permute.xlu0 %1401
    %1404 = vst.msk [vmem:[#allocation3] sm:$0xff] %vm152, %v1402
    // Predicated region
    $region50: #{tpu_custom_call.1} parent=1 // pred_check
      _
    $region51: #{tpu_custom_call.1} parent=1 // pred_check_branch
      %1406 = sbr.rel (0) target = $region53
    $region52: #{tpu_custom_call.1} parent=1 // pred_region
      %s1408 = ssub.s32 1024, 1024
      %1409 = vsyncadd [#allocation7], %s1408
      %s1410 = sshll.u32 [#allocation13], 4
      %s1411 = int_to_ptr.vmem [resolvable:$true] %s1410
      %1416 = dma.vmem_to_hbm [thread:$0]  %s1411, 1024, %s7, [#allocation7], 128, 128, 8
    $region53: #{tpu_custom_call.1} parent=1 // pred_fallthru
      _
    // Predicated region
    $region54: #{tpu_custom_call.1} parent=1 // pred_check
      _
    $region55: #{tpu_custom_call.1} parent=1 // pred_check_branch
      %1418 = sbr.rel (0) target = $region57
    $region56: #{tpu_custom_call.1} parent=1 // pred_region
      %1419 = dma.done [#allocation7], 1024
    $region57: #{tpu_custom_call.1} parent=1 // pred_fallthru
      _
    %1420 = vsyncpa [#allocation6], 1
    %1421 = vsyncpa [#allocation9], 1
    %1422 = vsyncpa [#allocation12], 1
    %1423 = vsyncpa [#allocation7], 1

</llo_original>
